<compile_context>
chip_gen: v6e
topology: v6e:2x2x1
jax: 0.10.0
libtpu: 0.0.40
codegen_flags: <defaults>
</compile_context>

<pallas_src>
import functools

import jax
import jax.numpy as jnp
import numpy as np
from jax.experimental import pallas as pl
from jax.experimental.pallas import tpu as pltpu


# ---------------------------------------------------------------------------
# Pallas kernel: fused 3x3 conv + BN (+ residual / + 1x1 projection) (+ ReLU)
# ---------------------------------------------------------------------------
def _conv3x3_fused_kernel(x_ref, w_ref, b_ref, *rest, th, th_in, wo, cin,
                          cres, cout, stride, relu, res_mode):
    """One (batch, row-tile) grid step.

    x_ref : (stride^2 * th_in, Wq, Cin)  phase-packed, halo'd input rows (bf16)
    w_ref : (9*Cin, Cout)  tap-major im2col weights, BN scale folded (bf16)
    b_ref : (1, Cout)      folded BN bias (f32)
    rest  : res_mode == "proj": (r_ref (th,wo,cres) f32, wd_ref (cres,cout) f32,
                                 bd_ref (1,cout) f32, o_ref, slab_ref)
            res_mode == "add" : (r_ref (th,wo,cout) f32, o_ref, slab_ref)
            res_mode is None  : (o_ref, slab_ref)
    """
    if res_mode == "proj":
        r_ref, wd_ref, bd_ref, o_ref, slab_ref = rest
    elif res_mode == "add":
        r_ref, o_ref, slab_ref = rest
    else:
        o_ref, slab_ref = rest

    # Stage the im2col slab in VMEM: the 9 shifted tap patches side by side on
    # the K (channel) axis -> a single big-K MXU matmul instead of 9 small
    # K=Cin matmuls.
    for dh in range(3):
        for dw in range(3):
            phase = (dh % stride) * stride + (dw % stride)
            r0 = phase * th_in + dh // stride
            c0 = dw // stride
            k = dh * 3 + dw
            slab_ref[:, :, pl.ds(k * cin, cin)] = x_ref[pl.ds(r0, th),
                                                        pl.ds(c0, wo), :]

    slab = slab_ref[...].reshape(th * wo, 9 * cin)            # bf16
    acc = jnp.dot(slab, w_ref[...],
                  preferred_element_type=jnp.float32)         # (th*wo, Cout)
    acc = acc + b_ref[...]                                    # folded-BN bias

    if res_mode == "proj":
        # Fused downsample identity: 1x1 conv (stride done in the wrapper by
        # subsampling) + folded BN, added to the accumulator in f32.
        ident = jnp.dot(r_ref[...].reshape(th * wo, cres), wd_ref[...],
                        preferred_element_type=jnp.float32) + bd_ref[...]
        acc = acc + ident
    elif res_mode == "add":
        acc = acc + r_ref[...].reshape(th * wo, cout).astype(jnp.float32)

    if relu:
        acc = jnp.maximum(acc, 0.0)
    o_ref[...] = acc.reshape(th, wo, cout).astype(o_ref.dtype)


# ---------------------------------------------------------------------------
# pallas_call wrapper
# ---------------------------------------------------------------------------
def _pick_row_tile(h_out, requested):
    target = min(h_out, requested if requested else 32)
    for t in range(target, 0, -1):
        if h_out % t == 0:
            return t
    return 1


def conv3x3_bn_act(x, w_col, bias, *, stride, relu, row_tile=None,
                   residual=None, proj=None, out_dtype=jnp.float32):
    """Fused 3x3 conv (pad=1, given stride) + folded BN (+res/+proj) (+ReLU).

    x        : (N, H, W, Cin) bf16 activations, NHWC
    w_col    : (9*Cin, Cout)  tap-major weights with BN scale folded, bf16
    bias     : (1, Cout)      folded BN bias, f32
    residual : optional (N, H/s, W/s, Cout) f32 tensor added before the ReLU
    proj     : optional (x_ds, wd, bd): fused 1x1-downsample identity branch
               x_ds (N, H/s, W/s, Cres) f32, wd (Cres, Cout) f32, bd (1, Cout)
    """
    N, H, W, Cin = x.shape
    Cout = w_col.shape[-1]
    s = stride
    assert H % s == 0 and W % s == 0, "spatial dims must be divisible by stride"
    Ho, Wo = H // s, W // s
    halo = 2 // s                       # extra input rows a tile needs past TH
    Hq, Wq = (H + 2) // s, (W + 2) // s

    # --- wrapper-side layout plumbing (one fused XLA copy pass) -------------
    # pad + space-to-depth phase packing:  xq[n, p*s+q, a, b, c] =
    #   xpad[n, a*s + p, b*s + q, c]   (for s=1 this is just the padded input)
    xpad = jnp.pad(x, ((0, 0), (1, 1), (1, 1), (0, 0)))
    xq = xpad.reshape(N, Hq, s, Wq, s, Cin).transpose(0, 2, 4, 1, 3, 5)
    xq = xq.reshape(N, s * s, Hq, Wq, Cin)

    th = _pick_row_tile(Ho, row_tile)
    T = Ho // th
    th_in = th + halo
    # overlapping (halo'd) row tiles; phases folded onto the row axis:
    #   xt[n, t, p*th_in + r, b, c] = xq[n, p, t*th + r, b, c]
    rows = np.arange(T, dtype=np.int32)[:, None] * th \
        + np.arange(th_in, dtype=np.int32)[None, :]
    xt = xq[:, :, rows]                               # (N, s*s, T, th_in, Wq, Cin)
    xt = xt.transpose(0, 2, 1, 3, 4, 5).reshape(N, T, s * s * th_in, Wq, Cin)

    if proj is not None:
        res_mode = "proj"
        x_ds, wd, bd = proj
        cres = x_ds.shape[-1]
        extra_args = [x_ds, wd, bd]
        extra_specs = [
            pl.BlockSpec((pl.Squeezed(), th, Wo, cres), lambda n, t: (n, t, 0, 0)),
            pl.BlockSpec((cres, Cout), lambda n, t: (0, 0)),
            pl.BlockSpec((1, Cout), lambda n, t: (0, 0)),
        ]
    elif residual is not None:
        res_mode = "add"
        cres = residual.shape[-1]
        extra_args = [residual]
        extra_specs = [
            pl.BlockSpec((pl.Squeezed(), th, Wo, cres), lambda n, t: (n, t, 0, 0)),
        ]
    else:
        res_mode, cres, extra_args, extra_specs = None, 0, [], []

    kern = functools.partial(
        _conv3x3_fused_kernel, th=th, th_in=th_in, wo=Wo, cin=Cin, cres=cres,
        cout=Cout, stride=s, relu=relu, res_mode=res_mode)

    flops = 2 * N * Ho * Wo * 9 * Cin * Cout
    if res_mode == "proj":
        flops += 2 * N * Ho * Wo * cres * Cout
    bytes_accessed = int(
        xt.size * xt.dtype.itemsize
        + w_col.size * w_col.dtype.itemsize
        + bias.size * bias.dtype.itemsize
        + N * Ho * Wo * Cout * jnp.dtype(out_dtype).itemsize
        + sum(int(a.size) * a.dtype.itemsize for a in extra_args))

    return pl.pallas_call(
        kern,
        out_shape=jax.ShapeDtypeStruct((N, Ho, Wo, Cout), out_dtype),
        grid=(N, T),
        in_specs=[
            pl.BlockSpec((pl.Squeezed(), pl.Squeezed(), s * s * th_in, Wq, Cin),
                         lambda n, t: (n, t, 0, 0, 0)),
            pl.BlockSpec((9 * Cin, Cout), lambda n, t: (0, 0)),
            pl.BlockSpec((1, Cout), lambda n, t: (0, 0)),
            *extra_specs,
        ],
        out_specs=pl.BlockSpec((pl.Squeezed(), th, Wo, Cout),
                               lambda n, t: (n, t, 0, 0)),
        scratch_shapes=[pltpu.VMEM((th, Wo, 9 * Cin), jnp.bfloat16)],
        compiler_params=pltpu.CompilerParams(
            dimension_semantics=("parallel", "parallel")),
        cost_estimate=pl.CostEstimate(flops=flops, transcendentals=0,
                                      bytes_accessed=bytes_accessed),
    )(xt, w_col, bias, *extra_args)


# ---------------------------------------------------------------------------
# BasicBlock forward
# ---------------------------------------------------------------------------
def _fold_bn(gamma, beta, mean, var, eps=1e-5):
    scale = gamma / jnp.sqrt(var + eps)
    bias = beta - mean * scale
    return scale.astype(jnp.float32), bias.astype(jnp.float32)


def _conv3x3_weights(w_oihw, bn_scale):
    """(Cout, Cin, 3, 3) -> (9*Cin, Cout), tap-major, BN scale folded, bf16."""
    cout, cin, kh, kw = w_oihw.shape
    w = jnp.transpose(w_oihw, (2, 3, 1, 0)).reshape(kh * kw * cin, cout)
    return (w * bn_scale[None, :]).astype(jnp.bfloat16)


def basic_block_forward(x_nchw, params, *, stride, row_tile=None):
    """Pallas implementation of BasicBlock.forward (attack_config=None path)."""
    inplanes = x_nchw.shape[1]
    planes = params["conv1_w"].shape[0]

    x = jnp.transpose(x_nchw, (0, 2, 3, 1)).astype(jnp.float32)   # NCHW -> NHWC
    x_bf = x.astype(jnp.bfloat16)

    # conv1 + bn1 + relu  (stride handled inside the kernel via phase packing)
    s1, b1 = _fold_bn(params["bn1_gamma"], params["bn1_beta"],
                      params["bn1_mean"], params["bn1_var"])
    w1 = _conv3x3_weights(params["conv1_w"], s1)
    out1 = conv3x3_bn_act(x_bf, w1, b1[None, :], stride=stride, relu=True,
                          row_tile=row_tile, out_dtype=jnp.bfloat16)

    # conv2 + bn2 + residual (+ fused downsample) + relu, all in one kernel
    s2, b2 = _fold_bn(params["bn2_gamma"], params["bn2_beta"],
                      params["bn2_mean"], params["bn2_var"])
    w2 = _conv3x3_weights(params["conv2_w"], s2)

    if stride != 1 or inplanes != planes:
        sd, bd = _fold_bn(params["bnd_gamma"], params["bnd_beta"],
                          params["bnd_mean"], params["bnd_var"])
        wd = (jnp.transpose(params["down_w"][:, :, 0, 0], (1, 0))
              * sd[None, :]).astype(jnp.float32)
        # 1x1 conv with stride s == spatial subsample + channel matmul; the
        # matmul + BN + add happen inside the second conv kernel ("proj" mode).
        x_ds = x[:, ::stride, ::stride, :]                        # f32 identity
        out = conv3x3_bn_act(out1, w2, b2[None, :], stride=1, relu=True,
                             row_tile=row_tile,
                             proj=(x_ds, wd, bd[None, :]),
                             out_dtype=jnp.float32)
    else:
        out = conv3x3_bn_act(out1, w2, b2[None, :], stride=1, relu=True,
                             row_tile=row_tile, residual=x,
                             out_dtype=jnp.float32)

    return jnp.transpose(out, (0, 3, 1, 2))                       # NHWC -> NCHW


# ---------------------------------------------------------------------------
# Pure-JAX reference (f32) for correctness checks
# ---------------------------------------------------------------------------
def _ref_conv(x, w, stride, pad):
    return jax.lax.conv_general_dilated(
        x, w, (stride, stride), ((pad, pad), (pad, pad)),
        dimension_numbers=("NCHW", "OIHW", "NCHW"))


def _ref_bn(x, g, b, m, v, eps=1e-5):
    g = g[None, :, None, None]
    b = b[None, :, None, None]
    m = m[None, :, None, None]
    v = v[None, :, None, None]
    return (x - m) / jnp.sqrt(v + eps) * g + b


def ref_basic_block(x, params, *, stride):
    inplanes = x.shape[1]
    planes = params["conv1_w"].shape[0]
    out = _ref_conv(x, params["conv1_w"], stride, 1)
    out = _ref_bn(out, params["bn1_gamma"], params["bn1_beta"],
                  params["bn1_mean"], params["bn1_var"])
    out = jax.nn.relu(out)
    identity = x
    if stride != 1 or inplanes != planes:
        identity = _ref_conv(x, params["down_w"], stride, 0)
        identity = _ref_bn(identity, params["bnd_gamma"], params["bnd_beta"],
                           params["bnd_mean"], params["bnd_var"])
    out = _ref_conv(out, params["conv2_w"], 1, 1)
    out = _ref_bn(out, params["bn2_gamma"], params["bn2_beta"],
                  params["bn2_mean"], params["bn2_var"])
    out = out + identity
    return jax.nn.relu(out)


# ---------------------------------------------------------------------------
if __name__ == "__main__":
    def bn_params(prefix, c):
        return {
            f"{prefix}_gamma": 1.0 + 0.10 * jnp.arange(c, dtype=jnp.float32),
            f"{prefix}_beta": 0.05 * jnp.arange(c, dtype=jnp.float32),
            f"{prefix}_mean": 0.01 * jnp.arange(c, dtype=jnp.float32),
            f"{prefix}_var": 1.0 + 0.02 * jnp.arange(c, dtype=jnp.float32),
        }

    def make_params(key, inplanes, planes):
        k1, k2, k3 = jax.random.split(key, 3)
        p = {
            "conv1_w": 0.1 * jax.random.normal(k1, (planes, inplanes, 3, 3),
                                               jnp.float32),
            "conv2_w": 0.1 * jax.random.normal(k2, (planes, planes, 3, 3),
                                               jnp.float32),
            "down_w": 0.1 * jax.random.normal(k3, (planes, inplanes, 1, 1),
                                              jnp.float32),
        }
        p.update(bn_params("bn1", planes))
        p.update(bn_params("bn2", planes))
        p.update(bn_params("bnd", planes))
        return p

    fwd = jax.jit(basic_block_forward, static_argnames=("stride", "row_tile"))

    key = jax.random.PRNGKey(0)
    kx1, kp1, kx2, kp2 = jax.random.split(key, 4)

    # Case 1: downsampling block (stride=2, inplanes != planes) -> fused proj.
    N, inplanes, planes, H, W, stride = 2, 4, 8, 16, 16, 2
    x = jax.random.normal(kx1, (N, inplanes, H, W), jnp.float32)
    params = make_params(kp1, inplanes, planes)
    out = jax.block_until_ready(fwd(x, params, stride=stride, row_tile=4))
    ref = jax.block_until_ready(ref_basic_block(x, params, stride=stride))
    assert out.shape == (N, planes, H // stride, W // stride), out.shape
    assert out.dtype == jnp.float32
    # bf16 MXU inputs with f32 accumulation -> loosened tolerance vs f32 ref.
    np.testing.assert_allclose(np.asarray(out), np.asarray(ref),
                               atol=5e-2, rtol=5e-2)

    # Case 2: identity block (stride=1, inplanes == planes) -> plain residual.
    N, inplanes, planes, H, W, stride = 2, 8, 8, 16, 16, 1
    x = jax.random.normal(kx2, (N, inplanes, H, W), jnp.float32)
    params = make_params(kp2, inplanes, planes)
    out = jax.block_until_ready(fwd(x, params, stride=stride, row_tile=8))
    ref = jax.block_until_ready(ref_basic_block(x, params, stride=stride))
    assert out.shape == (N, planes, H, W), out.shape
    np.testing.assert_allclose(np.asarray(out), np.asarray(ref),
                               atol=5e-2, rtol=5e-2)

    print("KERNEL_OK")
</pallas_src>

<mosaic_0001>
module attributes {stable_mosaic.version = 11 : i64} {
  func.func @_conv3x3_fused_kernel(%arg0: i32, %arg1: i32, %arg2: memref<1x1x20x9x4xbf16, #tpu.memory_space<vmem>>, %arg3: memref<36x8xbf16, #tpu.memory_space<vmem>>, %arg4: memref<1x8xf32, #tpu.memory_space<vmem>>, %arg5: memref<1x4x8x8xbf16, #tpu.memory_space<vmem>>, %arg6: memref<4x8x36xbf16, #tpu.memory_space<vmem>>) attributes {dimension_semantics = [#tpu.dimension_semantics<parallel>, #tpu.dimension_semantics<parallel>], iteration_bounds = array<i64: 2, 2>, scalar_prefetch = 0 : i64, scratch_operands = 1 : i64, tpu.core_type = #tpu.core_type<tc>, window_params = [{transform_indices = @transform_0, window_bounds = array<i64: 1, 1, 20, 9, 4>}, {pipeline_mode = #tpu.pipeline_mode<synchronous>, transform_indices = @transform_1, window_bounds = array<i64: 36, 8>}, {pipeline_mode = #tpu.pipeline_mode<synchronous>, transform_indices = @transform_2, window_bounds = array<i64: 1, 8>}, {transform_indices = @transform_3, window_bounds = array<i64: 1, 4, 8, 8>}]} {
    %c0 = arith.constant 0 : index
    %c0_0 = arith.constant 0 : index
    %c0_1 = arith.constant 0 : index
    %c0_2 = arith.constant 0 : index
    %c0_3 = arith.constant 0 : index
    %0 = vector.load %arg2[%c0, %c0_0, %c0_1, %c0_2, %c0_3] : memref<1x1x20x9x4xbf16, #tpu.memory_space<vmem>>, vector<1x1x4x8x4xbf16>
    %1 = vector.shape_cast %0 : vector<1x1x4x8x4xbf16> to vector<4x8x4xbf16>
    %c0_4 = arith.constant 0 : index
    %c0_5 = arith.constant 0 : index
    %c0_6 = arith.constant 0 : index
    %2 = vector.load %arg6[%c0_4, %c0_5, %c0_6] : memref<4x8x36xbf16, #tpu.memory_space<vmem>>, vector<4x8x4xbf16>
    tpu.vector_store %arg6[%c0_4, %c0_5, %c0_6], %1 {strides = array<i32>} : memref<4x8x36xbf16, #tpu.memory_space<vmem>>, vector<4x8x4xbf16>,
    %c0_7 = arith.constant 0 : index
    %c0_8 = arith.constant 0 : index
    %c5 = arith.constant 5 : index
    %c0_9 = arith.constant 0 : index
    %c0_10 = arith.constant 0 : index
    %3 = vector.load %arg2[%c0_7, %c0_8, %c5, %c0_9, %c0_10] : memref<1x1x20x9x4xbf16, #tpu.memory_space<vmem>>, vector<1x1x4x8x4xbf16>
    %4 = vector.shape_cast %3 : vector<1x1x4x8x4xbf16> to vector<4x8x4xbf16>
    %c0_11 = arith.constant 0 : index
    %c0_12 = arith.constant 0 : index
    %c4 = arith.constant 4 : index
    %5 = vector.load %arg6[%c0_11, %c0_12, %c4] : memref<4x8x36xbf16, #tpu.memory_space<vmem>>, vector<4x8x4xbf16>
    tpu.vector_store %arg6[%c0_11, %c0_12, %c4], %4 {strides = array<i32>} : memref<4x8x36xbf16, #tpu.memory_space<vmem>>, vector<4x8x4xbf16>,
    %c0_13 = arith.constant 0 : index
    %c0_14 = arith.constant 0 : index
    %c0_15 = arith.constant 0 : index
    %c1 = arith.constant 1 : index
    %c0_16 = arith.constant 0 : index
    %6 = vector.load %arg2[%c0_13, %c0_14, %c0_15, %c1, %c0_16] : memref<1x1x20x9x4xbf16, #tpu.memory_space<vmem>>, vector<1x1x4x8x4xbf16>
    %7 = vector.shape_cast %6 : vector<1x1x4x8x4xbf16> to vector<4x8x4xbf16>
    %c0_17 = arith.constant 0 : index
    %c0_18 = arith.constant 0 : index
    %c8 = arith.constant 8 : index
    %8 = vector.load %arg6[%c0_17, %c0_18, %c8] : memref<4x8x36xbf16, #tpu.memory_space<vmem>>, vector<4x8x4xbf16>
    tpu.vector_store %arg6[%c0_17, %c0_18, %c8], %7 {strides = array<i32>} : memref<4x8x36xbf16, #tpu.memory_space<vmem>>, vector<4x8x4xbf16>,
    %c0_19 = arith.constant 0 : index
    %c0_20 = arith.constant 0 : index
    %c10 = arith.constant 10 : index
    %c0_21 = arith.constant 0 : index
    %c0_22 = arith.constant 0 : index
    %9 = vector.load %arg2[%c0_19, %c0_20, %c10, %c0_21, %c0_22] : memref<1x1x20x9x4xbf16, #tpu.memory_space<vmem>>, vector<1x1x4x8x4xbf16>
    %10 = vector.shape_cast %9 : vector<1x1x4x8x4xbf16> to vector<4x8x4xbf16>
    %c0_23 = arith.constant 0 : index
    %c0_24 = arith.constant 0 : index
    %c12 = arith.constant 12 : index
    %11 = vector.load %arg6[%c0_23, %c0_24, %c12] : memref<4x8x36xbf16, #tpu.memory_space<vmem>>, vector<4x8x4xbf16>
    tpu.vector_store %arg6[%c0_23, %c0_24, %c12], %10 {strides = array<i32>} : memref<4x8x36xbf16, #tpu.memory_space<vmem>>, vector<4x8x4xbf16>,
    %c0_25 = arith.constant 0 : index
    %c0_26 = arith.constant 0 : index
    %c15 = arith.constant 15 : index
    %c0_27 = arith.constant 0 : index
    %c0_28 = arith.constant 0 : index
    %12 = vector.load %arg2[%c0_25, %c0_26, %c15, %c0_27, %c0_28] : memref<1x1x20x9x4xbf16, #tpu.memory_space<vmem>>, vector<1x1x4x8x4xbf16>
    %13 = vector.shape_cast %12 : vector<1x1x4x8x4xbf16> to vector<4x8x4xbf16>
    %c0_29 = arith.constant 0 : index
    %c0_30 = arith.constant 0 : index
    %c16 = arith.constant 16 : index
    %14 = vector.load %arg6[%c0_29, %c0_30, %c16] : memref<4x8x36xbf16, #tpu.memory_space<vmem>>, vector<4x8x4xbf16>
    tpu.vector_store %arg6[%c0_29, %c0_30, %c16], %13 {strides = array<i32>} : memref<4x8x36xbf16, #tpu.memory_space<vmem>>, vector<4x8x4xbf16>,
    %c0_31 = arith.constant 0 : index
    %c0_32 = arith.constant 0 : index
    %c10_33 = arith.constant 10 : index
    %c1_34 = arith.constant 1 : index
    %c0_35 = arith.constant 0 : index
    %15 = vector.load %arg2[%c0_31, %c0_32, %c10_33, %c1_34, %c0_35] : memref<1x1x20x9x4xbf16, #tpu.memory_space<vmem>>, vector<1x1x4x8x4xbf16>
    %16 = vector.shape_cast %15 : vector<1x1x4x8x4xbf16> to vector<4x8x4xbf16>
    %c0_36 = arith.constant 0 : index
    %c0_37 = arith.constant 0 : index
    %c20 = arith.constant 20 : index
    %17 = vector.load %arg6[%c0_36, %c0_37, %c20] : memref<4x8x36xbf16, #tpu.memory_space<vmem>>, vector<4x8x4xbf16>
    tpu.vector_store %arg6[%c0_36, %c0_37, %c20], %16 {strides = array<i32>} : memref<4x8x36xbf16, #tpu.memory_space<vmem>>, vector<4x8x4xbf16>,
    %c0_38 = arith.constant 0 : index
    %c0_39 = arith.constant 0 : index
    %c1_40 = arith.constant 1 : index
    %c0_41 = arith.constant 0 : index
    %c0_42 = arith.constant 0 : index
    %18 = vector.load %arg2[%c0_38, %c0_39, %c1_40, %c0_41, %c0_42] : memref<1x1x20x9x4xbf16, #tpu.memory_space<vmem>>, vector<1x1x4x8x4xbf16>
    %19 = vector.shape_cast %18 : vector<1x1x4x8x4xbf16> to vector<4x8x4xbf16>
    %c0_43 = arith.constant 0 : index
    %c0_44 = arith.constant 0 : index
    %c24 = arith.constant 24 : index
    %20 = vector.load %arg6[%c0_43, %c0_44, %c24] : memref<4x8x36xbf16, #tpu.memory_space<vmem>>, vector<4x8x4xbf16>
    tpu.vector_store %arg6[%c0_43, %c0_44, %c24], %19 {strides = array<i32>} : memref<4x8x36xbf16, #tpu.memory_space<vmem>>, vector<4x8x4xbf16>,
    %c0_45 = arith.constant 0 : index
    %c0_46 = arith.constant 0 : index
    %c6 = arith.constant 6 : index
    %c0_47 = arith.constant 0 : index
    %c0_48 = arith.constant 0 : index
    %21 = vector.load %arg2[%c0_45, %c0_46, %c6, %c0_47, %c0_48] : memref<1x1x20x9x4xbf16, #tpu.memory_space<vmem>>, vector<1x1x4x8x4xbf16>
    %22 = vector.shape_cast %21 : vector<1x1x4x8x4xbf16> to vector<4x8x4xbf16>
    %c0_49 = arith.constant 0 : index
    %c0_50 = arith.constant 0 : index
    %c28 = arith.constant 28 : index
    %23 = vector.load %arg6[%c0_49, %c0_50, %c28] : memref<4x8x36xbf16, #tpu.memory_space<vmem>>, vector<4x8x4xbf16>
    tpu.vector_store %arg6[%c0_49, %c0_50, %c28], %22 {strides = array<i32>} : memref<4x8x36xbf16, #tpu.memory_space<vmem>>, vector<4x8x4xbf16>,
    %c0_51 = arith.constant 0 : index
    %c0_52 = arith.constant 0 : index
    %c1_53 = arith.constant 1 : index
    %c1_54 = arith.constant 1 : index
    %c0_55 = arith.constant 0 : index
    %24 = vector.load %arg2[%c0_51, %c0_52, %c1_53, %c1_54, %c0_55] : memref<1x1x20x9x4xbf16, #tpu.memory_space<vmem>>, vector<1x1x4x8x4xbf16>
    %25 = vector.shape_cast %24 : vector<1x1x4x8x4xbf16> to vector<4x8x4xbf16>
    %c0_56 = arith.constant 0 : index
    %c0_57 = arith.constant 0 : index
    %c32 = arith.constant 32 : index
    %26 = vector.load %arg6[%c0_56, %c0_57, %c32] : memref<4x8x36xbf16, #tpu.memory_space<vmem>>, vector<4x8x4xbf16>
    tpu.vector_store %arg6[%c0_56, %c0_57, %c32], %25 {strides = array<i32>} : memref<4x8x36xbf16, #tpu.memory_space<vmem>>, vector<4x8x4xbf16>,
    %c0_58 = arith.constant 0 : index
    %c0_59 = arith.constant 0 : index
    %c0_60 = arith.constant 0 : index
    %27 = vector.load %arg6[%c0_58, %c0_59, %c0_60] : memref<4x8x36xbf16, #tpu.memory_space<vmem>>, vector<4x8x36xbf16>
    %28 = vector.shape_cast %27 : vector<4x8x36xbf16> to vector<32x36xbf16>
    %c0_61 = arith.constant 0 : index
    %c0_62 = arith.constant 0 : index
    %29 = vector.load %arg3[%c0_61, %c0_62] : memref<36x8xbf16, #tpu.memory_space<vmem>>, vector<36x8xbf16>
    %cst = arith.constant dense<0.000000e+00> : vector<32x8xf32>
    %30 = tpu.matmul %28, %29, %cst {dimension_numbers = #tpu.dot_dimension_numbers<[1], [0], [0], [1], [0, 0, 1, 1], [], []>} : vector<32x36xbf16>, vector<36x8xbf16>, vector<32x8xf32> -> vector<32x8xf32>
    %c0_63 = arith.constant 0 : index
    %c0_64 = arith.constant 0 : index
    %31 = vector.load %arg4[%c0_63, %c0_64] : memref<1x8xf32, #tpu.memory_space<vmem>>, vector<1x8xf32>
    %32 = vector.broadcast %31 : vector<1x8xf32> to vector<32x8xf32>
    %33 = arith.addf %30, %32 : vector<32x8xf32>
    %cst_65 = arith.constant 0.000000e+00 : f32
    %34 = vector.broadcast %cst_65 : f32 to vector<32x8xf32>
    %35 = arith.maximumf %33, %34 : vector<32x8xf32>
    %36 = vector.shape_cast %35 : vector<32x8xf32> to vector<4x8x8xf32>
    %37 = arith.truncf %36 : vector<4x8x8xf32> to vector<4x8x8xbf16>
    %c0_66 = arith.constant 0 : index
    %c0_67 = arith.constant 0 : index
    %c0_68 = arith.constant 0 : index
    %c0_69 = arith.constant 0 : index
    %38 = vector.load %arg5[%c0_66, %c0_67, %c0_68, %c0_69] : memref<1x4x8x8xbf16, #tpu.memory_space<vmem>>, vector<1x4x8x8xbf16>
    %39 = vector.shape_cast %38 : vector<1x4x8x8xbf16> to vector<4x8x8xbf16>
    %40 = vector.shape_cast %37 : vector<4x8x8xbf16> to vector<1x4x8x8xbf16>
    tpu.vector_store %arg5[%c0_66, %c0_67, %c0_68, %c0_69], %40 {strides = array<i32>} : memref<1x4x8x8xbf16, #tpu.memory_space<vmem>>, vector<1x4x8x8xbf16>,
    return
  }
  func.func @transform_0(%arg0: i32, %arg1: i32) -> (i32, i32, i32, i32, i32) {
    %c0_i32 = arith.constant 0 : i32
    %c0_i32_0 = arith.constant 0 : i32
    %c0_i32_1 = arith.constant 0 : i32
    %c0_i32_2 = arith.constant 0 : i32
    return %arg0, %arg1, %c0_i32, %c0_i32_0, %c0_i32_1 : i32, i32, i32, i32, i32
  }
  func.func @transform_1(%arg0: i32, %arg1: i32) -> (i32, i32) {
    %c0_i32 = arith.constant 0 : i32
    %c0_i32_0 = arith.constant 0 : i32
    %c0_i32_1 = arith.constant 0 : i32
    return %c0_i32, %c0_i32_0 : i32, i32
  }
  func.func @transform_2(%arg0: i32, %arg1: i32) -> (i32, i32) {
    %c0_i32 = arith.constant 0 : i32
    %c0_i32_0 = arith.constant 0 : i32
    %c0_i32_1 = arith.constant 0 : i32
    return %c0_i32, %c0_i32_0 : i32, i32
  }
  func.func @transform_3(%arg0: i32, %arg1: i32) -> (i32, i32, i32, i32) {
    %c0_i32 = arith.constant 0 : i32
    %c0_i32_0 = arith.constant 0 : i32
    %c0_i32_1 = arith.constant 0 : i32
    return %arg0, %arg1, %c0_i32, %c0_i32_0 : i32, i32, i32, i32
  }
}

module attributes {stable_mosaic.version = 11 : i64} {
  func.func @_conv3x3_fused_kernel(%arg0: i32, %arg1: i32, %arg2: memref<1x1x6x10x8xbf16, #tpu.memory_space<vmem>>, %arg3: memref<72x8xbf16, #tpu.memory_space<vmem>>, %arg4: memref<1x8xf32, #tpu.memory_space<vmem>>, %arg5: memref<1x4x8x4xf32, #tpu.memory_space<vmem>>, %arg6: memref<4x8xf32, #tpu.memory_space<vmem>>, %arg7: memref<1x8xf32, #tpu.memory_space<vmem>>, %arg8: memref<1x4x8x8xf32, #tpu.memory_space<vmem>>, %arg9: memref<4x8x72xbf16, #tpu.memory_space<vmem>>) attributes {dimension_semantics = [#tpu.dimension_semantics<parallel>, #tpu.dimension_semantics<parallel>], iteration_bounds = array<i64: 2, 2>, scalar_prefetch = 0 : i64, scratch_operands = 1 : i64, tpu.core_type = #tpu.core_type<tc>, window_params = [{transform_indices = @transform_0, window_bounds = array<i64: 1, 1, 6, 10, 8>}, {pipeline_mode = #tpu.pipeline_mode<synchronous>, transform_indices = @transform_1, window_bounds = array<i64: 72, 8>}, {pipeline_mode = #tpu.pipeline_mode<synchronous>, transform_indices = @transform_2, window_bounds = array<i64: 1, 8>}, {transform_indices = @transform_3, window_bounds = array<i64: 1, 4, 8, 4>}, {pipeline_mode = #tpu.pipeline_mode<synchronous>, transform_indices = @transform_4, window_bounds = array<i64: 4, 8>}, {pipeline_mode = #tpu.pipeline_mode<synchronous>, transform_indices = @transform_5, window_bounds = array<i64: 1, 8>}, {transform_indices = @transform_6, window_bounds = array<i64: 1, 4, 8, 8>}]} {
    %c0 = arith.constant 0 : index
    %c0_0 = arith.constant 0 : index
    %c0_1 = arith.constant 0 : index
    %c0_2 = arith.constant 0 : index
    %c0_3 = arith.constant 0 : index
    %0 = vector.load %arg2[%c0, %c0_0, %c0_1, %c0_2, %c0_3] : memref<1x1x6x10x8xbf16, #tpu.memory_space<vmem>>, vector<1x1x4x8x8xbf16>
    %1 = vector.shape_cast %0 : vector<1x1x4x8x8xbf16> to vector<4x8x8xbf16>
    %c0_4 = arith.constant 0 : index
    %c0_5 = arith.constant 0 : index
    %c0_6 = arith.constant 0 : index
    %2 = vector.load %arg9[%c0_4, %c0_5, %c0_6] : memref<4x8x72xbf16, #tpu.memory_space<vmem>>, vector<4x8x8xbf16>
    tpu.vector_store %arg9[%c0_4, %c0_5, %c0_6], %1 {strides = array<i32>} : memref<4x8x72xbf16, #tpu.memory_space<vmem>>, vector<4x8x8xbf16>,
    %c0_7 = arith.constant 0 : index
    %c0_8 = arith.constant 0 : index
    %c0_9 = arith.constant 0 : index
    %c1 = arith.constant 1 : index
    %c0_10 = arith.constant 0 : index
    %3 = vector.load %arg2[%c0_7, %c0_8, %c0_9, %c1, %c0_10] : memref<1x1x6x10x8xbf16, #tpu.memory_space<vmem>>, vector<1x1x4x8x8xbf16>
    %4 = vector.shape_cast %3 : vector<1x1x4x8x8xbf16> to vector<4x8x8xbf16>
    %c0_11 = arith.constant 0 : index
    %c0_12 = arith.constant 0 : index
    %c8 = arith.constant 8 : index
    %5 = vector.load %arg9[%c0_11, %c0_12, %c8] : memref<4x8x72xbf16, #tpu.memory_space<vmem>>, vector<4x8x8xbf16>
    tpu.vector_store %arg9[%c0_11, %c0_12, %c8], %4 {strides = array<i32>} : memref<4x8x72xbf16, #tpu.memory_space<vmem>>, vector<4x8x8xbf16>,
    %c0_13 = arith.constant 0 : index
    %c0_14 = arith.constant 0 : index
    %c0_15 = arith.constant 0 : index
    %c2 = arith.constant 2 : index
    %c0_16 = arith.constant 0 : index
    %6 = vector.load %arg2[%c0_13, %c0_14, %c0_15, %c2, %c0_16] : memref<1x1x6x10x8xbf16, #tpu.memory_space<vmem>>, vector<1x1x4x8x8xbf16>
    %7 = vector.shape_cast %6 : vector<1x1x4x8x8xbf16> to vector<4x8x8xbf16>
    %c0_17 = arith.constant 0 : index
    %c0_18 = arith.constant 0 : index
    %c16 = arith.constant 16 : index
    %8 = vector.load %arg9[%c0_17, %c0_18, %c16] : memref<4x8x72xbf16, #tpu.memory_space<vmem>>, vector<4x8x8xbf16>
    tpu.vector_store %arg9[%c0_17, %c0_18, %c16], %7 {strides = array<i32>} : memref<4x8x72xbf16, #tpu.memory_space<vmem>>, vector<4x8x8xbf16>,
    %c0_19 = arith.constant 0 : index
    %c0_20 = arith.constant 0 : index
    %c1_21 = arith.constant 1 : index
    %c0_22 = arith.constant 0 : index
    %c0_23 = arith.constant 0 : index
    %9 = vector.load %arg2[%c0_19, %c0_20, %c1_21, %c0_22, %c0_23] : memref<1x1x6x10x8xbf16, #tpu.memory_space<vmem>>, vector<1x1x4x8x8xbf16>
    %10 = vector.shape_cast %9 : vector<1x1x4x8x8xbf16> to vector<4x8x8xbf16>
    %c0_24 = arith.constant 0 : index
    %c0_25 = arith.constant 0 : index
    %c24 = arith.constant 24 : index
    %11 = vector.load %arg9[%c0_24, %c0_25, %c24] : memref<4x8x72xbf16, #tpu.memory_space<vmem>>, vector<4x8x8xbf16>
    tpu.vector_store %arg9[%c0_24, %c0_25, %c24], %10 {strides = array<i32>} : memref<4x8x72xbf16, #tpu.memory_space<vmem>>, vector<4x8x8xbf16>,
    %c0_26 = arith.constant 0 : index
    %c0_27 = arith.constant 0 : index
    %c1_28 = arith.constant 1 : index
    %c1_29 = arith.constant 1 : index
    %c0_30 = arith.constant 0 : index
    %12 = vector.load %arg2[%c0_26, %c0_27, %c1_28, %c1_29, %c0_30] : memref<1x1x6x10x8xbf16, #tpu.memory_space<vmem>>, vector<1x1x4x8x8xbf16>
    %13 = vector.shape_cast %12 : vector<1x1x4x8x8xbf16> to vector<4x8x8xbf16>
    %c0_31 = arith.constant 0 : index
    %c0_32 = arith.constant 0 : index
    %c32 = arith.constant 32 : index
    %14 = vector.load %arg9[%c0_31, %c0_32, %c32] : memref<4x8x72xbf16, #tpu.memory_space<vmem>>, vector<4x8x8xbf16>
    tpu.vector_store %arg9[%c0_31, %c0_32, %c32], %13 {strides = array<i32>} : memref<4x8x72xbf16, #tpu.memory_space<vmem>>, vector<4x8x8xbf16>,
    %c0_33 = arith.constant 0 : index
    %c0_34 = arith.constant 0 : index
    %c1_35 = arith.constant 1 : index
    %c2_36 = arith.constant 2 : index
    %c0_37 = arith.constant 0 : index
    %15 = vector.load %arg2[%c0_33, %c0_34, %c1_35, %c2_36, %c0_37] : memref<1x1x6x10x8xbf16, #tpu.memory_space<vmem>>, vector<1x1x4x8x8xbf16>
    %16 = vector.shape_cast %15 : vector<1x1x4x8x8xbf16> to vector<4x8x8xbf16>
    %c0_38 = arith.constant 0 : index
    %c0_39 = arith.constant 0 : index
    %c40 = arith.constant 40 : index
    %17 = vector.load %arg9[%c0_38, %c0_39, %c40] : memref<4x8x72xbf16, #tpu.memory_space<vmem>>, vector<4x8x8xbf16>
    tpu.vector_store %arg9[%c0_38, %c0_39, %c40], %16 {strides = array<i32>} : memref<4x8x72xbf16, #tpu.memory_space<vmem>>, vector<4x8x8xbf16>,
    %c0_40 = arith.constant 0 : index
    %c0_41 = arith.constant 0 : index
    %c2_42 = arith.constant 2 : index
    %c0_43 = arith.constant 0 : index
    %c0_44 = arith.constant 0 : index
    %18 = vector.load %arg2[%c0_40, %c0_41, %c2_42, %c0_43, %c0_44] : memref<1x1x6x10x8xbf16, #tpu.memory_space<vmem>>, vector<1x1x4x8x8xbf16>
    %19 = vector.shape_cast %18 : vector<1x1x4x8x8xbf16> to vector<4x8x8xbf16>
    %c0_45 = arith.constant 0 : index
    %c0_46 = arith.constant 0 : index
    %c48 = arith.constant 48 : index
    %20 = vector.load %arg9[%c0_45, %c0_46, %c48] : memref<4x8x72xbf16, #tpu.memory_space<vmem>>, vector<4x8x8xbf16>
    tpu.vector_store %arg9[%c0_45, %c0_46, %c48], %19 {strides = array<i32>} : memref<4x8x72xbf16, #tpu.memory_space<vmem>>, vector<4x8x8xbf16>,
    %c0_47 = arith.constant 0 : index
    %c0_48 = arith.constant 0 : index
    %c2_49 = arith.constant 2 : index
    %c1_50 = arith.constant 1 : index
    %c0_51 = arith.constant 0 : index
    %21 = vector.load %arg2[%c0_47, %c0_48, %c2_49, %c1_50, %c0_51] : memref<1x1x6x10x8xbf16, #tpu.memory_space<vmem>>, vector<1x1x4x8x8xbf16>
    %22 = vector.shape_cast %21 : vector<1x1x4x8x8xbf16> to vector<4x8x8xbf16>
    %c0_52 = arith.constant 0 : index
    %c0_53 = arith.constant 0 : index
    %c56 = arith.constant 56 : index
    %23 = vector.load %arg9[%c0_52, %c0_53, %c56] : memref<4x8x72xbf16, #tpu.memory_space<vmem>>, vector<4x8x8xbf16>
    tpu.vector_store %arg9[%c0_52, %c0_53, %c56], %22 {strides = array<i32>} : memref<4x8x72xbf16, #tpu.memory_space<vmem>>, vector<4x8x8xbf16>,
    %c0_54 = arith.constant 0 : index
    %c0_55 = arith.constant 0 : index
    %c2_56 = arith.constant 2 : index
    %c2_57 = arith.constant 2 : index
    %c0_58 = arith.constant 0 : index
    %24 = vector.load %arg2[%c0_54, %c0_55, %c2_56, %c2_57, %c0_58] : memref<1x1x6x10x8xbf16, #tpu.memory_space<vmem>>, vector<1x1x4x8x8xbf16>
    %25 = vector.shape_cast %24 : vector<1x1x4x8x8xbf16> to vector<4x8x8xbf16>
    %c0_59 = arith.constant 0 : index
    %c0_60 = arith.constant 0 : index
    %c64 = arith.constant 64 : index
    %26 = vector.load %arg9[%c0_59, %c0_60, %c64] : memref<4x8x72xbf16, #tpu.memory_space<vmem>>, vector<4x8x8xbf16>
    tpu.vector_store %arg9[%c0_59, %c0_60, %c64], %25 {strides = array<i32>} : memref<4x8x72xbf16, #tpu.memory_space<vmem>>, vector<4x8x8xbf16>,
    %c0_61 = arith.constant 0 : index
    %c0_62 = arith.constant 0 : index
    %c0_63 = arith.constant 0 : index
    %27 = vector.load %arg9[%c0_61, %c0_62, %c0_63] : memref<4x8x72xbf16, #tpu.memory_space<vmem>>, vector<4x8x72xbf16>
    %28 = vector.shape_cast %27 : vector<4x8x72xbf16> to vector<32x72xbf16>
    %c0_64 = arith.constant 0 : index
    %c0_65 = arith.constant 0 : index
    %29 = vector.load %arg3[%c0_64, %c0_65] : memref<72x8xbf16, #tpu.memory_space<vmem>>, vector<72x8xbf16>
    %cst = arith.constant dense<0.000000e+00> : vector<32x8xf32>
    %30 = tpu.matmul %28, %29, %cst {dimension_numbers = #tpu.dot_dimension_numbers<[1], [0], [0], [1], [0, 0, 1, 1], [], []>} : vector<32x72xbf16>, vector<72x8xbf16>, vector<32x8xf32> -> vector<32x8xf32>
    %c0_66 = arith.constant 0 : index
    %c0_67 = arith.constant 0 : index
    %31 = vector.load %arg4[%c0_66, %c0_67] : memref<1x8xf32, #tpu.memory_space<vmem>>, vector<1x8xf32>
    %32 = vector.broadcast %31 : vector<1x8xf32> to vector<32x8xf32>
    %33 = arith.addf %30, %32 : vector<32x8xf32>
    %c0_68 = arith.constant 0 : index
    %c0_69 = arith.constant 0 : index
    %c0_70 = arith.constant 0 : index
    %c0_71 = arith.constant 0 : index
    %34 = vector.load %arg5[%c0_68, %c0_69, %c0_70, %c0_71] : memref<1x4x8x4xf32, #tpu.memory_space<vmem>>, vector<1x4x8x4xf32>
    %35 = vector.shape_cast %34 : vector<1x4x8x4xf32> to vector<4x8x4xf32>
    %36 = vector.shape_cast %35 : vector<4x8x4xf32> to vector<32x4xf32>
    %c0_72 = arith.constant 0 : index
    %c0_73 = arith.constant 0 : index
    %37 = vector.load %arg6[%c0_72, %c0_73] : memref<4x8xf32, #tpu.memory_space<vmem>>, vector<4x8xf32>
    %cst_74 = arith.constant dense<0.000000e+00> : vector<32x8xf32>
    %38 = tpu.matmul %36, %37, %cst_74 {dimension_numbers = #tpu.dot_dimension_numbers<[1], [0], [0], [1], [0, 0, 1, 1], [], []>} : vector<32x4xf32>, vector<4x8xf32>, vector<32x8xf32> -> vector<32x8xf32>
    %c0_75 = arith.constant 0 : index
    %c0_76 = arith.constant 0 : index
    %39 = vector.load %arg7[%c0_75, %c0_76] : memref<1x8xf32, #tpu.memory_space<vmem>>, vector<1x8xf32>
    %40 = vector.broadcast %39 : vector<1x8xf32> to vector<32x8xf32>
    %41 = arith.addf %38, %40 : vector<32x8xf32>
    %42 = arith.addf %33, %41 : vector<32x8xf32>
    %cst_77 = arith.constant 0.000000e+00 : f32
    %43 = vector.broadcast %cst_77 : f32 to vector<32x8xf32>
    %44 = arith.maximumf %42, %43 : vector<32x8xf32>
    %45 = vector.shape_cast %44 : vector<32x8xf32> to vector<4x8x8xf32>
    %c0_78 = arith.constant 0 : index
    %c0_79 = arith.constant 0 : index
    %c0_80 = arith.constant 0 : index
    %c0_81 = arith.constant 0 : index
    %46 = vector.load %arg8[%c0_78, %c0_79, %c0_80, %c0_81] : memref<1x4x8x8xf32, #tpu.memory_space<vmem>>, vector<1x4x8x8xf32>
    %47 = vector.shape_cast %46 : vector<1x4x8x8xf32> to vector<4x8x8xf32>
    %48 = vector.shape_cast %45 : vector<4x8x8xf32> to vector<1x4x8x8xf32>
    tpu.vector_store %arg8[%c0_78, %c0_79, %c0_80, %c0_81], %48 {strides = array<i32>} : memref<1x4x8x8xf32, #tpu.memory_space<vmem>>, vector<1x4x8x8xf32>,
    return
  }
  func.func @transform_0(%arg0: i32, %arg1: i32) -> (i32, i32, i32, i32, i32) {
    %c0_i32 = arith.constant 0 : i32
    %c0_i32_0 = arith.constant 0 : i32
    %c0_i32_1 = arith.constant 0 : i32
    %c0_i32_2 = arith.constant 0 : i32
    return %arg0, %arg1, %c0_i32, %c0_i32_0, %c0_i32_1 : i32, i32, i32, i32, i32
  }
  func.func @transform_1(%arg0: i32, %arg1: i32) -> (i32, i32) {
    %c0_i32 = arith.constant 0 : i32
    %c0_i32_0 = arith.constant 0 : i32
    %c0_i32_1 = arith.constant 0 : i32
    return %c0_i32, %c0_i32_0 : i32, i32
  }
  func.func @transform_2(%arg0: i32, %arg1: i32) -> (i32, i32) {
    %c0_i32 = arith.constant 0 : i32
    %c0_i32_0 = arith.constant 0 : i32
    %c0_i32_1 = arith.constant 0 : i32
    return %c0_i32, %c0_i32_0 : i32, i32
  }
  func.func @transform_3(%arg0: i32, %arg1: i32) -> (i32, i32, i32, i32) {
    %c0_i32 = arith.constant 0 : i32
    %c0_i32_0 = arith.constant 0 : i32
    %c0_i32_1 = arith.constant 0 : i32
    return %arg0, %arg1, %c0_i32, %c0_i32_0 : i32, i32, i32, i32
  }
  func.func @transform_4(%arg0: i32, %arg1: i32) -> (i32, i32) {
    %c0_i32 = arith.constant 0 : i32
    %c0_i32_0 = arith.constant 0 : i32
    %c0_i32_1 = arith.constant 0 : i32
    return %c0_i32, %c0_i32_0 : i32, i32
  }
  func.func @transform_5(%arg0: i32, %arg1: i32) -> (i32, i32) {
    %c0_i32 = arith.constant 0 : i32
    %c0_i32_0 = arith.constant 0 : i32
    %c0_i32_1 = arith.constant 0 : i32
    return %c0_i32, %c0_i32_0 : i32, i32
  }
  func.func @transform_6(%arg0: i32, %arg1: i32) -> (i32, i32, i32, i32) {
    %c0_i32 = arith.constant 0 : i32
    %c0_i32_0 = arith.constant 0 : i32
    %c0_i32_1 = arith.constant 0 : i32
    return %arg0, %arg1, %c0_i32, %c0_i32_0 : i32, i32, i32, i32
  }
}

</mosaic_0001>

<llo_original>
// kernel: basic_block_forward.2
$region0: #{basic_block_forward.2}
  #allocation0 [shape = 'u32[]', space=smem, size = 0x4, offset = 0x4, fixed_abs, tag = 'smem constant byte address 0x4 - core index']
  #allocation1 [shape = 'u32[144,128]{1,0:T(1,128)}', space=vmem, size = 0x12000, scoped, tag = 'internal scratch']
  #allocation2 [shape = 'bf16[4,8,36]{2,1,0:T(8,128)(2,1)}', space=vmem, size = 0x2000, scoped, tag = 'scratch operand']
  %s0 = inlined_call_operand.vmem [shape: bf16[2,2,20,9,4], index: 0, kind: input, shape index: {}]
  %s1 = inlined_call_operand.vmem [shape: bf16[36,8], index: 1, kind: input, shape index: {}]
  %s2 = inlined_call_operand.vmem [shape: f32[1,8], index: 2, kind: input, shape index: {}]
  %s3 = inlined_call_operand.vmem [shape: bf16[2,8,8,8], index: 3, kind: output, shape index: {}]
  %s4 = sld [smem:[#allocation0]]
  $region45: #{basic_block_forward.2} parent=0
    _
  %s6 = ssub.s32 1, %s4
  %s7 = scalar_select 0, %s6, %s4
  loop: start=0, step=1, limit=6
  $region2: #{basic_block_forward.2} parent=0 // loop_pre_header
    _
  $region3: #{basic_block_forward.2} parent=0 // loop_header
    %s9 = sphi 0, %s13
    %p10 = scmp.ge.s32.totalorder %s9, 6
    %s16 = sphi 0, %s28
    %s17 = sphi 0, %s24
    %s18 = sphi 0, %s16
    %s19 = sphi 0, %s17
    %s20 = sphi 0, %s18
    %s21 = sphi 0, %s19
    %s33 = sphi 0, %s35
    %s36 = sphi 0, %s33
    %s37 = sphi 0, %s36
    %s53 = sphi 0, %s37
    %s57 = sphi 0, %s57
    %s59 = sphi 0, %s57
    %s60 = sphi 0, %s59
    %s74 = sphi 0, %s60
    %s78 = sphi 0, %s78
    %s80 = sphi 0, %s78
    %s81 = sphi 0, %s80
    %s95 = sphi 0, %s81
    %s103 = sphi 0, %s105
    %s106 = sphi 0, %s103
    %s107 = sphi 0, %s106
    %s123 = sphi 0, %s107
  $region4: #{basic_block_forward.2} parent=0 // loop_header_branch
    %12 = sbr.rel (%p10) target = $region8
  $region5: #{basic_block_forward.2} parent=0 // loop_body
    %s14 = ssub.s32 %s9, 1
    %s15 = ssub.s32 %s9, 2
    %s22 = sadd.s32 1, %s17
    %p23 = scmp.ge.s32.totalorder %s22, 2
    %s24 = scalar_select %p23, 0, %s22
    %s25 = sadd.s32 1, %s16
    %s26 = scalar_select %p23, %s25, %s16
    %p27 = scmp.ge.s32.totalorder %s26, 2
    %s28 = scalar_select %p27, 0, %s26
    %s29 = ssub.s32 %s16, %s28
    %s30 = ssub.s32 %s17, %s24
    %s31 = sor.u32 %s29, %s30
    %p32 = scmp.eq.s32.totalorder %s31, 0
    %s34 = sadd.s32 %s33, 1
    %s35 = scalar_select %p32, %s33, %s34
    %p38 = pneg %p32
    %p39 = scmp.eq.s32.totalorder %s9, 3
    %p40 = por %p38, %p39
    %p41 = scmp.ne.s32.totalorder %s33, %s36
    %p42 = scmp.eq.s32.totalorder %s9, 0
    %p43 = por %p41, %p42
    %p44 = scmp.ne.s32.totalorder %s33, %s36
    %p45 = scmp.eq.s32.totalorder %s14, 3
    %p46 = por %p44, %p45
    %p47 = scmp.ne.s32.totalorder %s36, %s37
    %p48 = scmp.eq.s32.totalorder %s14, 0
    %p49 = por %p47, %p48
    %p50 = scmp.ne.s32.totalorder %s36, %s37
    %p51 = scmp.eq.s32.totalorder %s15, 3
    %p52 = por %p50, %p51
    %p54 = scmp.ne.s32.totalorder %s37, %s53
    %p55 = scmp.eq.s32.totalorder %s15, 0
    %p56 = por %p54, %p55
    %s58 = sadd.s32 %s57, 1
    %p61 = scmp.eq.s32.totalorder %s9, 3
    %p62 = scmp.ne.s32.totalorder %s57, %s59
    %p63 = scmp.eq.s32.totalorder %s9, 0
    %p64 = por %p62, %p63
    %p65 = scmp.ne.s32.totalorder %s57, %s59
    %p66 = scmp.eq.s32.totalorder %s14, 3
    %p67 = por %p65, %p66
    %p68 = scmp.ne.s32.totalorder %s59, %s60
    %p69 = scmp.eq.s32.totalorder %s14, 0
    %p70 = por %p68, %p69
    %p71 = scmp.ne.s32.totalorder %s59, %s60
    %p72 = scmp.eq.s32.totalorder %s15, 3
    %p73 = por %p71, %p72
    %p75 = scmp.ne.s32.totalorder %s60, %s74
    %p76 = scmp.eq.s32.totalorder %s15, 0
    %p77 = por %p75, %p76
    %s79 = sadd.s32 %s78, 1
    %p82 = scmp.eq.s32.totalorder %s9, 3
    %p83 = scmp.ne.s32.totalorder %s78, %s80
    %p84 = scmp.eq.s32.totalorder %s9, 0
    %p85 = por %p83, %p84
    %p86 = scmp.ne.s32.totalorder %s78, %s80
    %p87 = scmp.eq.s32.totalorder %s14, 3
    %p88 = por %p86, %p87
    %p89 = scmp.ne.s32.totalorder %s80, %s81
    %p90 = scmp.eq.s32.totalorder %s14, 0
    %p91 = por %p89, %p90
    %p92 = scmp.ne.s32.totalorder %s80, %s81
    %p93 = scmp.eq.s32.totalorder %s15, 3
    %p94 = por %p92, %p93
    %p96 = scmp.ne.s32.totalorder %s81, %s95
    %p97 = scmp.eq.s32.totalorder %s15, 0
    %p98 = por %p96, %p97
    %s99 = ssub.s32 %s16, %s28
    %s100 = ssub.s32 %s17, %s24
    %s101 = sor.u32 %s99, %s100
    %p102 = scmp.eq.s32.totalorder %s101, 0
    %s104 = sadd.s32 %s103, 1
    %s105 = scalar_select %p102, %s103, %s104
    %p108 = pneg %p102
    %p109 = scmp.eq.s32.totalorder %s9, 3
    %p110 = por %p108, %p109
    %p111 = scmp.ne.s32.totalorder %s103, %s106
    %p112 = scmp.eq.s32.totalorder %s9, 0
    %p113 = por %p111, %p112
    %p114 = scmp.ne.s32.totalorder %s103, %s106
    %p115 = scmp.eq.s32.totalorder %s14, 3
    %p116 = por %p114, %p115
    %p117 = scmp.ne.s32.totalorder %s106, %s107
    %p118 = scmp.eq.s32.totalorder %s14, 0
    %p119 = por %p117, %p118
    %p120 = scmp.ne.s32.totalorder %s106, %s107
    %p121 = scmp.eq.s32.totalorder %s15, 3
    %p122 = por %p120, %p121
    %p124 = scmp.ne.s32.totalorder %s107, %s123
    %p125 = scmp.eq.s32.totalorder %s15, 0
    %p126 = por %p124, %p125
    %p127 = scmp.le.s32.totalorder 1, %s9
    %p128 = scmp.lt.s32.totalorder %s9, 5
    %p129 = pnand %p127, %p128
    %p130 = pneg %p129
    // Predicated region
    $region9: #{basic_block_forward.2} parent=5 // pred_check
      _
    $region10: #{basic_block_forward.2} parent=5 // pred_check_branch
      %132 = sbr.rel (%p129) target = $region12
    $region11: #{basic_block_forward.2} parent=5 // pred_region
      %s133 = ssub.s32 %s9, 1
      // Predicated region
      $region13: #{basic_block_forward.2} parent=11 // pred_check
        %p134 = pneg %p70
      $region14: #{basic_block_forward.2} parent=11 // pred_check_branch
        %136 = sbr.rel (%p134) target = $region16
      $region15: #{basic_block_forward.2} parent=11 // pred_region
        _
      $region16: #{basic_block_forward.2} parent=11 // pred_fallthru
        _
      // Predicated region
      $region17: #{basic_block_forward.2} parent=11 // pred_check
        %p137 = pneg %p91
      $region18: #{basic_block_forward.2} parent=11 // pred_check_branch
        %139 = sbr.rel (%p137) target = $region20
      $region19: #{basic_block_forward.2} parent=11 // pred_region
        _
      $region20: #{basic_block_forward.2} parent=11 // pred_fallthru
        _
    $region12: #{basic_block_forward.2} parent=5 // pred_fallthru
      _
    %p140 = scmp.lt.s32.totalorder %s9, 4
    // Predicated region
    $region21: #{basic_block_forward.2} parent=5 // pred_check
      %p141 = pneg %p140
    $region22: #{basic_block_forward.2} parent=5 // pred_check_branch
      %143 = sbr.rel (%p141) target = $region24
    $region23: #{basic_block_forward.2} parent=5 // pred_region
      // Predicated region
      $region25: #{basic_block_forward.2} parent=23 // pred_check
        %p144 = pneg %p43
      $region26: #{basic_block_forward.2} parent=23 // pred_check_branch
        %146 = sbr.rel (%p144) target = $region28
      $region27: #{basic_block_forward.2} parent=23 // pred_region
        %p147 = scmp.lt.s32.totalorder %s16, 1
        %s148 = scalar_select %p147, %s16, 1
        %p149 = scmp.lt.s32.totalorder %s17, 1
        %s150 = scalar_select %p149, %s17, 1
        %s151 = smul.addr %s150, 40
        %s152 = smul.addr %s148, 80
        %s153 = sadd.s32 %s151, %s152
        %s154 = smul.addr %s153, 4
        %s155 = scalar_lea.vmem %s0, %s154
      $region28: #{basic_block_forward.2} parent=23 // pred_fallthru
        _
    $region24: #{basic_block_forward.2} parent=5 // pred_fallthru
      _
    %p156 = scmp.le.s32.totalorder 1, %s9
    %p157 = scmp.lt.s32.totalorder %s9, 5
    %p158 = pnand %p156, %p157
    %p159 = pneg %p158
    // Predicated region
    $region29: #{basic_block_forward.2} parent=5 // pred_check
      _
    $region30: #{basic_block_forward.2} parent=5 // pred_check_branch
      %161 = sbr.rel (%p158) target = $region32
    $region31: #{basic_block_forward.2} parent=5 // pred_region
      %s162 = ssub.s32 %s9, 1
      %p163 = scmp.lt.s32.totalorder %s18, 1
      %s164 = scalar_select %p163, %s18, 1
      %p165 = scmp.lt.s32.totalorder %s19, 1
      %s166 = scalar_select %p165, %s19, 1
      %s167 = smul.addr %s166, 40
      %s168 = smul.addr %s164, 80
      %s169 = sadd.s32 %s167, %s168
      %s170 = smul.addr %s169, 4
      %s171 = scalar_lea.vmem %s0, %s170
      %p172 = pneg %p49
      %p173 = pneg %p46
      %p174 = pneg %p70
      %p175 = pneg %p67
      %p176 = pneg %p91
      %p177 = pneg %p88
      %p178 = pneg %p119
      %p179 = pneg %p116
      %s180 = smul.u32 4, %s19
      %p181 = scmp.lt.s32.totalorder %s18, 1
      %s182 = scalar_select %p181, %s18, 1
      %p183 = scmp.lt.s32.totalorder %s180, 7
      %s184 = scalar_select %p183, %s180, 7
      %s185 = smul.addr %s182, 8
      %s186 = sadd.s32 %s184, %s185
      %s187 = smul.addr %s186, 4
      %s188 = scalar_lea.vmem %s3, %s187
      %p189 = scmp.lt.s32.totalorder %s18, 1
      %s190 = scalar_select %p189, %s18, 1
      %p191 = scmp.lt.s32.totalorder %s19, 1
      %s192 = scalar_select %p191, %s19, 1
      %s193 = smul.addr %s192, 40
      %s194 = smul.addr %s190, 80
      %s195 = sadd.s32 %s193, %s194
      %s196 = smul.addr %s195, 4
      %s197 = scalar_lea.vmem %s0, %s196
      %s198 = smul.u32 4, %s19
      %p199 = scmp.lt.s32.totalorder %s18, 1
      %s200 = scalar_select %p199, %s18, 1
      %p201 = scmp.lt.s32.totalorder %s198, 7
      %s202 = scalar_select %p201, %s198, 7
      %s203 = smul.addr %s200, 8
      %s204 = sadd.s32 %s202, %s203
      %s205 = smul.addr %s204, 4
      %s206 = scalar_lea.vmem %s3, %s205
      %s207 = smul.u32 4, %s19
      %v209 = vld [vmem:[%s197] sm:$0xf]
      %v210 = vld [vmem:[%s197 + $0x8] sm:$0xf]
      %v211 = vld [vmem:[%s197 + $0x10] sm:$0xf]
      %v212 = vld [vmem:[%s197 + $0x18] sm:$0xf]
      %vm213 = vcmask 27648
      %214 = vst.msk [vmem:[#allocation2] sm:$0xf] %vm213, %v209
      %215 = vst.msk [vmem:[#allocation2 + $0x4] sm:$0xf] %vm213, %v210
      %216 = vst.msk [vmem:[#allocation2 + $0x8] sm:$0xf] %vm213, %v211
      %217 = vst.msk [vmem:[#allocation2 + $0xc] sm:$0xf] %vm213, %v212
      %s218 = scalar_lea.vmem %s197, 40
      %v219 = vld [vmem:[%s218] sm:$0xf]
      %v220 = vld [vmem:[%s218 + $0x8] sm:$0xf]
      %v221 = vld [vmem:[%s218 + $0x10] sm:$0xf]
      %v222 = vld [vmem:[%s218 + $0x18] sm:$0xf]
      %227 = vrot.lane.b32.xlu0 %v219, 4
      %v228 = vpop.permute.xlu0 %227
      %229 = vrot.lane.b32.xlu0 %v220, 4
      %v230 = vpop.permute.xlu0 %229
      %231 = vrot.lane.b32.xlu0 %v221, 4
      %v232 = vpop.permute.xlu0 %231
      %233 = vrot.lane.b32.xlu0 %v222, 4
      %v234 = vpop.permute.xlu0 %233
      %vm239 = vcmask 60448
      %240 = vst.msk [vmem:[#allocation2] sm:$0xf] %vm239, %v228
      %241 = vst.msk [vmem:[#allocation2 + $0x4] sm:$0xf] %vm239, %v230
      %242 = vst.msk [vmem:[#allocation2 + $0x8] sm:$0xf] %vm239, %v232
      %243 = vst.msk [vmem:[#allocation2 + $0xc] sm:$0xf] %vm239, %v234
      %v244 = vld [vmem:[%s197] sm:$0xf]
      %v245 = vld [vmem:[%s197 + $0x4] sm:$0x1]
      %v246 = vld [vmem:[%s197 + $0x8] sm:$0xf]
      %v247 = vld [vmem:[%s197 + $0xc] sm:$0x1]
      %v248 = vld [vmem:[%s197 + $0x10] sm:$0xf]
      %v249 = vld [vmem:[%s197 + $0x14] sm:$0x1]
      %v250 = vld [vmem:[%s197 + $0x18] sm:$0xf]
      %v251 = vld [vmem:[%s197 + $0x1c] sm:$0x1]
      %vm252 = vsmask.f32 3328
      %vm253 = vsmask.f32 7440
      %vm254 = vmor %vm252, %vm253
      %v256 = vshrl.u32 %v244, 16
      %v258 = vrot.slane %v256, 4
      %v259 = vshll.u32 %v244, 16
      %v261 = vrot.slane %v259, 5
      %v262 = vor.u32 %v258, %v261
      %v263 = vrot.slane %v262, 4
      %v265 = vshll.u32 %v245, 16
      %v267 = vrot.slane %v265, 5
      %v268 = vsel %vm254, %v263, %v267
      %v270 = vshrl.u32 %v246, 16
      %v272 = vrot.slane %v270, 4
      %v273 = vshll.u32 %v246, 16
      %v275 = vrot.slane %v273, 5
      %v276 = vor.u32 %v272, %v275
      %v277 = vrot.slane %v276, 4
      %v279 = vshll.u32 %v247, 16
      %v281 = vrot.slane %v279, 5
      %v282 = vsel %vm254, %v277, %v281
      %v284 = vshrl.u32 %v248, 16
      %v286 = vrot.slane %v284, 4
      %v287 = vshll.u32 %v248, 16
      %v289 = vrot.slane %v287, 5
      %v290 = vor.u32 %v286, %v289
      %v291 = vrot.slane %v290, 4
      %v293 = vshll.u32 %v249, 16
      %v295 = vrot.slane %v293, 5
      %v296 = vsel %vm254, %v291, %v295
      %v298 = vshrl.u32 %v250, 16
      %v300 = vrot.slane %v298, 4
      %v301 = vshll.u32 %v250, 16
      %v303 = vrot.slane %v301, 5
      %v304 = vor.u32 %v300, %v303
      %v305 = vrot.slane %v304, 4
      %v307 = vshll.u32 %v251, 16
      %v309 = vrot.slane %v307, 5
      %v310 = vsel %vm254, %v305, %v309
      %311 = vrot.lane.b32.xlu0 %v268, 8
      %v312 = vpop.permute.xlu0 %311
      %313 = vrot.lane.b32.xlu0 %v282, 8
      %v314 = vpop.permute.xlu0 %313
      %315 = vrot.lane.b32.xlu0 %v296, 8
      %v316 = vpop.permute.xlu0 %315
      %317 = vrot.lane.b32.xlu0 %v310, 8
      %v318 = vpop.permute.xlu0 %317
      %vm323 = vcmask 93248
      %324 = vst.msk [vmem:[#allocation2] sm:$0xf] %vm323, %v312
      %325 = vst.msk [vmem:[#allocation2 + $0x4] sm:$0xf] %vm323, %v314
      %326 = vst.msk [vmem:[#allocation2 + $0x8] sm:$0xf] %vm323, %v316
      %327 = vst.msk [vmem:[#allocation2 + $0xc] sm:$0xf] %vm323, %v318
      %s328 = scalar_lea.vmem %s197, 80
      %v329 = vld [vmem:[%s328] sm:$0xf]
      %v330 = vld [vmem:[%s328 + $0x8] sm:$0xf]
      %v331 = vld [vmem:[%s328 + $0x10] sm:$0xf]
      %v332 = vld [vmem:[%s328 + $0x18] sm:$0xf]
      %337 = vrot.lane.b32.xlu0 %v329, 12
      %v338 = vpop.permute.xlu0 %337
      %339 = vrot.lane.b32.xlu0 %v330, 12
      %v340 = vpop.permute.xlu0 %339
      %341 = vrot.lane.b32.xlu0 %v331, 12
      %v342 = vpop.permute.xlu0 %341
      %343 = vrot.lane.b32.xlu0 %v332, 12
      %v344 = vpop.permute.xlu0 %343
      %vm349 = vcmask 126048
      %350 = vst.msk [vmem:[#allocation2] sm:$0xf] %vm349, %v338
      %351 = vst.msk [vmem:[#allocation2 + $0x4] sm:$0xf] %vm349, %v340
      %352 = vst.msk [vmem:[#allocation2 + $0x8] sm:$0xf] %vm349, %v342
      %353 = vst.msk [vmem:[#allocation2 + $0xc] sm:$0xf] %vm349, %v344
      %s354 = scalar_lea.vmem %s197, 120
      %v355 = vld [vmem:[%s354] sm:$0xf]
      %v356 = vld [vmem:[%s354 + $0x8] sm:$0xf]
      %v357 = vld [vmem:[%s354 + $0x10] sm:$0xf]
      %v358 = vld [vmem:[%s354 + $0x18] sm:$0xf]
      %363 = vrot.lane.b32.xlu0 %v355, 16
      %v364 = vpop.permute.xlu0 %363
      %365 = vrot.lane.b32.xlu0 %v356, 16
      %v366 = vpop.permute.xlu0 %365
      %367 = vrot.lane.b32.xlu0 %v357, 16
      %v368 = vpop.permute.xlu0 %367
      %369 = vrot.lane.b32.xlu0 %v358, 16
      %v370 = vpop.permute.xlu0 %369
      %vm375 = vcmask 158848
      %376 = vst.msk [vmem:[#allocation2] sm:$0xf] %vm375, %v364
      %377 = vst.msk [vmem:[#allocation2 + $0x4] sm:$0xf] %vm375, %v366
      %378 = vst.msk [vmem:[#allocation2 + $0x8] sm:$0xf] %vm375, %v368
      %379 = vst.msk [vmem:[#allocation2 + $0xc] sm:$0xf] %vm375, %v370
      %v380 = vld [vmem:[%s328] sm:$0xf]
      %v381 = vld [vmem:[%s328 + $0x4] sm:$0x1]
      %v382 = vld [vmem:[%s328 + $0x8] sm:$0xf]
      %v383 = vld [vmem:[%s328 + $0xc] sm:$0x1]
      %v384 = vld [vmem:[%s328 + $0x10] sm:$0xf]
      %v385 = vld [vmem:[%s328 + $0x14] sm:$0x1]
      %v386 = vld [vmem:[%s328 + $0x18] sm:$0xf]
      %v387 = vld [vmem:[%s328 + $0x1c] sm:$0x1]
      %v389 = vshrl.u32 %v380, 16
      %v391 = vrot.slane %v389, 4
      %v392 = vshll.u32 %v380, 16
      %v394 = vrot.slane %v392, 5
      %v395 = vor.u32 %v391, %v394
      %v396 = vrot.slane %v395, 4
      %v398 = vshll.u32 %v381, 16
      %v400 = vrot.slane %v398, 5
      %v401 = vsel %vm254, %v396, %v400
      %v403 = vshrl.u32 %v382, 16
      %v405 = vrot.slane %v403, 4
      %v406 = vshll.u32 %v382, 16
      %v408 = vrot.slane %v406, 5
      %v409 = vor.u32 %v405, %v408
      %v410 = vrot.slane %v409, 4
      %v412 = vshll.u32 %v383, 16
      %v414 = vrot.slane %v412, 5
      %v415 = vsel %vm254, %v410, %v414
      %v417 = vshrl.u32 %v384, 16
      %v419 = vrot.slane %v417, 4
      %v420 = vshll.u32 %v384, 16
      %v422 = vrot.slane %v420, 5
      %v423 = vor.u32 %v419, %v422
      %v424 = vrot.slane %v423, 4
      %v426 = vshll.u32 %v385, 16
      %v428 = vrot.slane %v426, 5
      %v429 = vsel %vm254, %v424, %v428
      %v431 = vshrl.u32 %v386, 16
      %v433 = vrot.slane %v431, 4
      %v434 = vshll.u32 %v386, 16
      %v436 = vrot.slane %v434, 5
      %v437 = vor.u32 %v433, %v436
      %v438 = vrot.slane %v437, 4
      %v440 = vshll.u32 %v387, 16
      %v442 = vrot.slane %v440, 5
      %v443 = vsel %vm254, %v438, %v442
      %444 = vrot.lane.b32.xlu0 %v401, 20
      %v445 = vpop.permute.xlu0 %444
      %446 = vrot.lane.b32.xlu0 %v415, 20
      %v447 = vpop.permute.xlu0 %446
      %448 = vrot.lane.b32.xlu0 %v429, 20
      %v449 = vpop.permute.xlu0 %448
      %450 = vrot.lane.b32.xlu0 %v443, 20
      %v451 = vpop.permute.xlu0 %450
      %vm456 = vcmask 191648
      %457 = vst.msk [vmem:[#allocation2] sm:$0xf] %vm456, %v445
      %458 = vst.msk [vmem:[#allocation2 + $0x4] sm:$0xf] %vm456, %v447
      %459 = vst.msk [vmem:[#allocation2 + $0x8] sm:$0xf] %vm456, %v449
      %460 = vst.msk [vmem:[#allocation2 + $0xc] sm:$0xf] %vm456, %v451
      %s461 = scalar_lea.vmem %s197, 8
      %v462 = vld [vmem:[%s461] sm:$0xf]
      %v463 = vld [vmem:[%s461 + $0x8] sm:$0xf]
      %v464 = vld [vmem:[%s461 + $0x10] sm:$0xf]
      %v465 = vld [vmem:[%s461 + $0x18] sm:$0xf]
      %470 = vrot.lane.b32.xlu0 %v462, 24
      %v471 = vpop.permute.xlu0 %470
      %472 = vrot.lane.b32.xlu0 %v463, 24
      %v473 = vpop.permute.xlu0 %472
      %474 = vrot.lane.b32.xlu0 %v464, 24
      %v475 = vpop.permute.xlu0 %474
      %476 = vrot.lane.b32.xlu0 %v465, 24
      %v477 = vpop.permute.xlu0 %476
      %vm482 = vcmask 224448
      %483 = vst.msk [vmem:[#allocation2] sm:$0xf] %vm482, %v471
      %484 = vst.msk [vmem:[#allocation2 + $0x4] sm:$0xf] %vm482, %v473
      %485 = vst.msk [vmem:[#allocation2 + $0x8] sm:$0xf] %vm482, %v475
      %486 = vst.msk [vmem:[#allocation2 + $0xc] sm:$0xf] %vm482, %v477
      %s487 = scalar_lea.vmem %s197, 48
      %v488 = vld [vmem:[%s487] sm:$0xf]
      %v489 = vld [vmem:[%s487 + $0x8] sm:$0xf]
      %v490 = vld [vmem:[%s487 + $0x10] sm:$0xf]
      %v491 = vld [vmem:[%s487 + $0x18] sm:$0xf]
      %496 = vrot.lane.b32.xlu0 %v488, 28
      %v497 = vpop.permute.xlu0 %496
      %498 = vrot.lane.b32.xlu0 %v489, 28
      %v499 = vpop.permute.xlu0 %498
      %500 = vrot.lane.b32.xlu0 %v490, 28
      %v501 = vpop.permute.xlu0 %500
      %502 = vrot.lane.b32.xlu0 %v491, 28
      %v503 = vpop.permute.xlu0 %502
      %vm508 = vcmask 257248
      %509 = vst.msk [vmem:[#allocation2] sm:$0xf] %vm508, %v497
      %510 = vst.msk [vmem:[#allocation2 + $0x4] sm:$0xf] %vm508, %v499
      %511 = vst.msk [vmem:[#allocation2 + $0x8] sm:$0xf] %vm508, %v501
      %512 = vst.msk [vmem:[#allocation2 + $0xc] sm:$0xf] %vm508, %v503
      %v513 = vld [vmem:[%s461] sm:$0xf]
      %v514 = vld [vmem:[%s461 + $0x4] sm:$0x1]
      %v515 = vld [vmem:[%s461 + $0x8] sm:$0xf]
      %v516 = vld [vmem:[%s461 + $0xc] sm:$0x1]
      %v517 = vld [vmem:[%s461 + $0x10] sm:$0xf]
      %v518 = vld [vmem:[%s461 + $0x14] sm:$0x1]
      %v519 = vld [vmem:[%s461 + $0x18] sm:$0xf]
      %v520 = vld [vmem:[%s461 + $0x1c] sm:$0x1]
      %v522 = vshrl.u32 %v513, 16
      %v524 = vrot.slane %v522, 4
      %v525 = vshll.u32 %v513, 16
      %v527 = vrot.slane %v525, 5
      %v528 = vor.u32 %v524, %v527
      %v529 = vrot.slane %v528, 4
      %v531 = vshll.u32 %v514, 16
      %v533 = vrot.slane %v531, 5
      %v534 = vsel %vm254, %v529, %v533
      %v536 = vshrl.u32 %v515, 16
      %v538 = vrot.slane %v536, 4
      %v539 = vshll.u32 %v515, 16
      %v541 = vrot.slane %v539, 5
      %v542 = vor.u32 %v538, %v541
      %v543 = vrot.slane %v542, 4
      %v545 = vshll.u32 %v516, 16
      %v547 = vrot.slane %v545, 5
      %v548 = vsel %vm254, %v543, %v547
      %v550 = vshrl.u32 %v517, 16
      %v552 = vrot.slane %v550, 4
      %v553 = vshll.u32 %v517, 16
      %v555 = vrot.slane %v553, 5
      %v556 = vor.u32 %v552, %v555
      %v557 = vrot.slane %v556, 4
      %v559 = vshll.u32 %v518, 16
      %v561 = vrot.slane %v559, 5
      %v562 = vsel %vm254, %v557, %v561
      %v564 = vshrl.u32 %v519, 16
      %v566 = vrot.slane %v564, 4
      %v567 = vshll.u32 %v519, 16
      %v569 = vrot.slane %v567, 5
      %v570 = vor.u32 %v566, %v569
      %v571 = vrot.slane %v570, 4
      %v573 = vshll.u32 %v520, 16
      %v575 = vrot.slane %v573, 5
      %v576 = vsel %vm254, %v571, %v575
      %577 = vrot.lane.b32.xlu0 %v534, 32
      %v578 = vpop.permute.xlu0 %577
      %579 = vrot.lane.b32.xlu0 %v548, 32
      %v580 = vpop.permute.xlu0 %579
      %581 = vrot.lane.b32.xlu0 %v562, 32
      %v582 = vpop.permute.xlu0 %581
      %583 = vrot.lane.b32.xlu0 %v576, 32
      %v584 = vpop.permute.xlu0 %583
      %vm589 = vcmask 290048
      %590 = vst.msk [vmem:[#allocation2] sm:$0xf] %vm589, %v578
      %591 = vst.msk [vmem:[#allocation2 + $0x4] sm:$0xf] %vm589, %v580
      %592 = vst.msk [vmem:[#allocation2 + $0x8] sm:$0xf] %vm589, %v582
      %593 = vst.msk [vmem:[#allocation2 + $0xc] sm:$0xf] %vm589, %v584
      %v594 = vld [vmem:[#allocation2] sm:$0xf]
      %v595 = vld [vmem:[#allocation2 + $0x4] sm:$0xf]
      %v596 = vld [vmem:[#allocation2 + $0x8] sm:$0xf]
      %v597 = vld [vmem:[#allocation2 + $0xc] sm:$0xf]
      %v598 = vld [vmem:[%s1] sm:$0xf]
      %v599 = vld [vmem:[%s1 + $0x4] sm:$0xf]
      %v600 = vld [vmem:[%s1 + $0x8] sm:$0xf]
      %v601 = vld [vmem:[%s1 + $0xc] sm:$0xf]
      %v602 = vld [vmem:[%s1 + $0x10] sm:$0x3]
      %v603 = vld [vmem:[%s2] sm:$0x1]
      %v605 = vlaneseq
      %v606 = vshrl.u32 %v605, 7
      %v607 = vsub.s32 0, %v606
      %v608 = vrot.slane %v603, %v607
      %v614 = vunpack.c.l.b16 %v594
      %v615 = vunpack.c.l.b16 %v595
      %v616 = vunpack.c.l.b16 %v596
      %v617 = vunpack.c.l.b16 %v597
      %v618 = vpack.c.b16 %v615, %v614
      %v619 = vpack.c.b16 %v617, %v616
      %v625 = vunpack.c.l.b16 %v598
      %v626 = vunpack.c.l.b16 %v599
      %v627 = vunpack.c.l.b16 %v600
      %v628 = vunpack.c.l.b16 %v601
      %v629 = vunpack.c.l.b16 %v602
      %v630 = vpack.c.b16 %v626, %v625
      %v631 = vpack.c.b16 %v628, %v627
      %v632 = vpack.c.b16 %v629, %v629
      %vm635 = vcmask 293888
      %v637 = vsel %vm635, %v618, 0
      %v640 = vsel %vm635, %v619, 0
      %vm642 = vcmask 1041408
      %v644 = vsel %vm642, %v632, 0
      %646 = vmatprep.subr.bf16.mxu0 0
      %647 = vmatpush1.bf16.msra.mxu0 0
      %648 = vmatprep.subr.bf16.mxu0 0
      %649 = vmatpush1.bf16.msra.mxu0 0
      %650 = vmatprep.subr.bf16.mxu0 0
      %651 = vmatpush1.bf16.msra.mxu0 0
      %652 = vmatprep.subr.bf16.mxu0 0
      %653 = vmatpush1.bf16.msra.mxu0 0
      %654 = vmatprep.subr.bf16.mxu0 0
      %655 = vmatpush1.bf16.msra.mxu0 0
      %656 = vmatprep.subr.bf16.mxu0 0
      %657 = vmatpush1.bf16.msra.mxu0 %v644
      %658 = vmatprep.subr.bf16.mxu0 0
      %659 = vmatpush1.bf16.msra.mxu0 %v631
      %660 = vmatprep.subr.bf16.mxu0 0
      %661 = vmatpush1.bf16.msra.mxu0 %v630
      %662 = vmatprep.subr.bf16.mxu0 0
      %663 = vmatpush2.bf16.msra.mxu0 0
      %664 = vmatprep.subr.bf16.mxu0 0
      %665 = vmatpush2.bf16.msra.mxu0 0
      %666 = vmatprep.subr.bf16.mxu0 0
      %667 = vmatpush2.bf16.msra.mxu0 0
      %668 = vmatprep.subr.bf16.mxu0 0
      %669 = vmatpush2.bf16.msra.mxu0 0
      %670 = vmatprep.subr.bf16.mxu0 0
      %671 = vmatpush2.bf16.msra.mxu0 0
      %672 = vmatprep.subr.bf16.mxu0 0
      %673 = vmatpush2.bf16.msra.mxu0 0
      %674 = vmatprep.subr.bf16.mxu0 0
      %675 = vmatpush2.bf16.msra.mxu0 0
      %676 = vmatprep.subr.bf16.mxu0 0
      %677 = vmatpush2.bf16.msra.mxu0 0
      %678 = vmatprep.mubr.bf16.mxu0 0
      %679 = vmatmul.mubr.bf16.gmra.mxu0 %v637
      %v680 = vpop.f32.mrf.mxu0
      %v681 = vadd.f32 %v608, %v680
      %v682 = vpop.f32.mrf.mxu0
      %v683 = vpop.f32.mrf.mxu0
      %v684 = vadd.f32 %v608, %v683
      %v685 = vpop.f32.mrf.mxu0
      %686 = vmatprep.mubr.bf16.mxu0 0
      %687 = vmatmul.mubr.bf16.gmra.mxu0 %v640
      %v688 = vpop.f32.mrf.mxu0
      %v689 = vadd.f32 %v608, %v688
      %v690 = vpop.f32.mrf.mxu0
      %v691 = vpop.f32.mrf.mxu0
      %v692 = vadd.f32 %v608, %v691
      %v693 = vpop.f32.mrf.mxu0
      %694 = vdwg.mxu0
      %v695 = vmax.f32 %v681, 0.0
      %v696 = vmax.f32 %v684, 0.0
      %v697 = vmax.f32 %v689, 0.0
      %v698 = vmax.f32 %v692, 0.0
      %v699 = vpack.c.bf16 %v695, %v695
      %v700 = vpack.c.bf16 %v696, %v696
      %v701 = vpack.c.bf16 %v697, %v697
      %v702 = vpack.c.bf16 %v698, %v698
      %vm703 = vcmask 60416
      %704 = vst.msk [vmem:[%s206] sm:$0xf] %vm703, %v699
      %705 = vst.msk [vmem:[%s206 + $0x4] sm:$0xf] %vm703, %v700
      %706 = vst.msk [vmem:[%s206 + $0x8] sm:$0xf] %vm703, %v701
      %707 = vst.msk [vmem:[%s206 + $0xc] sm:$0xf] %vm703, %v702
      %s708 = smul.u32 4, %s19
      %p709 = scmp.lt.s32.totalorder %s18, 1
      %s710 = scalar_select %p709, %s18, 1
      %p711 = scmp.lt.s32.totalorder %s708, 7
      %s712 = scalar_select %p711, %s708, 7
      %s713 = smul.addr %s710, 8
      %s714 = sadd.s32 %s712, %s713
      %s715 = smul.addr %s714, 4
      %s716 = scalar_lea.vmem %s3, %s715
      // Predicated region
      $region33: #{basic_block_forward.2} parent=31 // pred_check
        %p717 = pneg %p116
      $region34: #{basic_block_forward.2} parent=31 // pred_check_branch
        %719 = sbr.rel (%p717) target = $region36
      $region35: #{basic_block_forward.2} parent=31 // pred_region
        %s720 = smul.u32 4, %s19
      $region36: #{basic_block_forward.2} parent=31 // pred_fallthru
        _
    $region32: #{basic_block_forward.2} parent=5 // pred_fallthru
      _
    %p721 = scmp.le.s32.totalorder 2, %s9
    // Predicated region
    $region37: #{basic_block_forward.2} parent=5 // pred_check
      %p722 = pneg %p721
    $region38: #{basic_block_forward.2} parent=5 // pred_check_branch
      %724 = sbr.rel (%p722) target = $region40
    $region39: #{basic_block_forward.2} parent=5 // pred_region
      %s725 = ssub.s32 %s9, 2
      // Predicated region
      $region41: #{basic_block_forward.2} parent=39 // pred_check
        %p726 = pneg %p122
      $region42: #{basic_block_forward.2} parent=39 // pred_check_branch
        %728 = sbr.rel (%p726) target = $region44
      $region43: #{basic_block_forward.2} parent=39 // pred_region
        %s729 = smul.u32 4, %s21
        %p730 = scmp.lt.s32.totalorder %s20, 1
        %s731 = scalar_select %p730, %s20, 1
        %p732 = scmp.lt.s32.totalorder %s729, 7
        %s733 = scalar_select %p732, %s729, 7
        %s734 = smul.addr %s731, 8
        %s735 = sadd.s32 %s733, %s734
        %s736 = smul.addr %s735, 4
        %s737 = scalar_lea.vmem %s3, %s736
      $region44: #{basic_block_forward.2} parent=39 // pred_fallthru
        _
    $region40: #{basic_block_forward.2} parent=5 // pred_fallthru
      _
  $region6: #{basic_block_forward.2} parent=0 // loop_footer
    %s13 = sadd.s32 1, %s9
  $region7: #{basic_block_forward.2} parent=0 // loop_footer_branch
    %8 = sbr.rel target = $region3
  $region8: #{basic_block_forward.2} parent=0 // loop_exit
    _

// kernel: basic_block_forward.3
$region0: #{basic_block_forward.3}
  #allocation0 [shape = 'u32[]', space=smem, size = 0x4, offset = 0x4, fixed_abs, tag = 'smem constant byte address 0x4 - core index']
  #allocation1 [shape = 'u32[144,128]{1,0:T(1,128)}', space=vmem, size = 0x12000, scoped, tag = 'internal scratch']
  #allocation2 [shape = 'bf16[4,8,72]{2,1,0:T(8,128)(2,1)}', space=vmem, size = 0x2000, scoped, tag = 'scratch operand']
  %s0 = inlined_call_operand.vmem [shape: bf16[2,2,6,10,8], index: 0, kind: input, shape index: {}]
  %s1 = inlined_call_operand.vmem [shape: bf16[72,8], index: 1, kind: input, shape index: {}]
  %s2 = inlined_call_operand.vmem [shape: f32[1,8], index: 2, kind: input, shape index: {}]
  %s3 = inlined_call_operand.vmem [shape: f32[2,8,8,4], index: 3, kind: input, shape index: {}]
  %s4 = inlined_call_operand.vmem [shape: f32[4,8], index: 4, kind: input, shape index: {}]
  %s5 = inlined_call_operand.vmem [shape: f32[1,8], index: 5, kind: input, shape index: {}]
  %s6 = inlined_call_operand.vmem [shape: f32[2,8,8,8], index: 6, kind: output, shape index: {}]
  %s7 = sld [smem:[#allocation0]]
  $region57: #{basic_block_forward.3} parent=0
    _
  %s9 = ssub.s32 1, %s7
  %s10 = scalar_select 0, %s9, %s7
  loop: start=0, step=1, limit=6
  $region2: #{basic_block_forward.3} parent=0 // loop_pre_header
    _
  $region3: #{basic_block_forward.3} parent=0 // loop_header
    %s12 = sphi 0, %s16
    %p13 = scmp.ge.s32.totalorder %s12, 6
    %s19 = sphi 0, %s31
    %s20 = sphi 0, %s27
    %s21 = sphi 0, %s19
    %s22 = sphi 0, %s20
    %s23 = sphi 0, %s21
    %s24 = sphi 0, %s22
    %s36 = sphi 0, %s38
    %s39 = sphi 0, %s36
    %s40 = sphi 0, %s39
    %s56 = sphi 0, %s40
    %s60 = sphi 0, %s60
    %s62 = sphi 0, %s60
    %s63 = sphi 0, %s62
    %s77 = sphi 0, %s63
    %s81 = sphi 0, %s81
    %s83 = sphi 0, %s81
    %s84 = sphi 0, %s83
    %s98 = sphi 0, %s84
    %s106 = sphi 0, %s108
    %s109 = sphi 0, %s106
    %s110 = sphi 0, %s109
    %s126 = sphi 0, %s110
    %s130 = sphi 0, %s130
    %s132 = sphi 0, %s130
    %s133 = sphi 0, %s132
    %s147 = sphi 0, %s133
    %s151 = sphi 0, %s151
    %s153 = sphi 0, %s151
    %s154 = sphi 0, %s153
    %s168 = sphi 0, %s154
    %s176 = sphi 0, %s178
    %s179 = sphi 0, %s176
    %s180 = sphi 0, %s179
    %s196 = sphi 0, %s180
  $region4: #{basic_block_forward.3} parent=0 // loop_header_branch
    %15 = sbr.rel (%p13) target = $region8
  $region5: #{basic_block_forward.3} parent=0 // loop_body
    %s17 = ssub.s32 %s12, 1
    %s18 = ssub.s32 %s12, 2
    %s25 = sadd.s32 1, %s20
    %p26 = scmp.ge.s32.totalorder %s25, 2
    %s27 = scalar_select %p26, 0, %s25
    %s28 = sadd.s32 1, %s19
    %s29 = scalar_select %p26, %s28, %s19
    %p30 = scmp.ge.s32.totalorder %s29, 2
    %s31 = scalar_select %p30, 0, %s29
    %s32 = ssub.s32 %s19, %s31
    %s33 = ssub.s32 %s20, %s27
    %s34 = sor.u32 %s32, %s33
    %p35 = scmp.eq.s32.totalorder %s34, 0
    %s37 = sadd.s32 %s36, 1
    %s38 = scalar_select %p35, %s36, %s37
    %p41 = pneg %p35
    %p42 = scmp.eq.s32.totalorder %s12, 3
    %p43 = por %p41, %p42
    %p44 = scmp.ne.s32.totalorder %s36, %s39
    %p45 = scmp.eq.s32.totalorder %s12, 0
    %p46 = por %p44, %p45
    %p47 = scmp.ne.s32.totalorder %s36, %s39
    %p48 = scmp.eq.s32.totalorder %s17, 3
    %p49 = por %p47, %p48
    %p50 = scmp.ne.s32.totalorder %s39, %s40
    %p51 = scmp.eq.s32.totalorder %s17, 0
    %p52 = por %p50, %p51
    %p53 = scmp.ne.s32.totalorder %s39, %s40
    %p54 = scmp.eq.s32.totalorder %s18, 3
    %p55 = por %p53, %p54
    %p57 = scmp.ne.s32.totalorder %s40, %s56
    %p58 = scmp.eq.s32.totalorder %s18, 0
    %p59 = por %p57, %p58
    %s61 = sadd.s32 %s60, 1
    %p64 = scmp.eq.s32.totalorder %s12, 3
    %p65 = scmp.ne.s32.totalorder %s60, %s62
    %p66 = scmp.eq.s32.totalorder %s12, 0
    %p67 = por %p65, %p66
    %p68 = scmp.ne.s32.totalorder %s60, %s62
    %p69 = scmp.eq.s32.totalorder %s17, 3
    %p70 = por %p68, %p69
    %p71 = scmp.ne.s32.totalorder %s62, %s63
    %p72 = scmp.eq.s32.totalorder %s17, 0
    %p73 = por %p71, %p72
    %p74 = scmp.ne.s32.totalorder %s62, %s63
    %p75 = scmp.eq.s32.totalorder %s18, 3
    %p76 = por %p74, %p75
    %p78 = scmp.ne.s32.totalorder %s63, %s77
    %p79 = scmp.eq.s32.totalorder %s18, 0
    %p80 = por %p78, %p79
    %s82 = sadd.s32 %s81, 1
    %p85 = scmp.eq.s32.totalorder %s12, 3
    %p86 = scmp.ne.s32.totalorder %s81, %s83
    %p87 = scmp.eq.s32.totalorder %s12, 0
    %p88 = por %p86, %p87
    %p89 = scmp.ne.s32.totalorder %s81, %s83
    %p90 = scmp.eq.s32.totalorder %s17, 3
    %p91 = por %p89, %p90
    %p92 = scmp.ne.s32.totalorder %s83, %s84
    %p93 = scmp.eq.s32.totalorder %s17, 0
    %p94 = por %p92, %p93
    %p95 = scmp.ne.s32.totalorder %s83, %s84
    %p96 = scmp.eq.s32.totalorder %s18, 3
    %p97 = por %p95, %p96
    %p99 = scmp.ne.s32.totalorder %s84, %s98
    %p100 = scmp.eq.s32.totalorder %s18, 0
    %p101 = por %p99, %p100
    %s102 = ssub.s32 %s19, %s31
    %s103 = ssub.s32 %s20, %s27
    %s104 = sor.u32 %s102, %s103
    %p105 = scmp.eq.s32.totalorder %s104, 0
    %s107 = sadd.s32 %s106, 1
    %s108 = scalar_select %p105, %s106, %s107
    %p111 = pneg %p105
    %p112 = scmp.eq.s32.totalorder %s12, 3
    %p113 = por %p111, %p112
    %p114 = scmp.ne.s32.totalorder %s106, %s109
    %p115 = scmp.eq.s32.totalorder %s12, 0
    %p116 = por %p114, %p115
    %p117 = scmp.ne.s32.totalorder %s106, %s109
    %p118 = scmp.eq.s32.totalorder %s17, 3
    %p119 = por %p117, %p118
    %p120 = scmp.ne.s32.totalorder %s109, %s110
    %p121 = scmp.eq.s32.totalorder %s17, 0
    %p122 = por %p120, %p121
    %p123 = scmp.ne.s32.totalorder %s109, %s110
    %p124 = scmp.eq.s32.totalorder %s18, 3
    %p125 = por %p123, %p124
    %p127 = scmp.ne.s32.totalorder %s110, %s126
    %p128 = scmp.eq.s32.totalorder %s18, 0
    %p129 = por %p127, %p128
    %s131 = sadd.s32 %s130, 1
    %p134 = scmp.eq.s32.totalorder %s12, 3
    %p135 = scmp.ne.s32.totalorder %s130, %s132
    %p136 = scmp.eq.s32.totalorder %s12, 0
    %p137 = por %p135, %p136
    %p138 = scmp.ne.s32.totalorder %s130, %s132
    %p139 = scmp.eq.s32.totalorder %s17, 3
    %p140 = por %p138, %p139
    %p141 = scmp.ne.s32.totalorder %s132, %s133
    %p142 = scmp.eq.s32.totalorder %s17, 0
    %p143 = por %p141, %p142
    %p144 = scmp.ne.s32.totalorder %s132, %s133
    %p145 = scmp.eq.s32.totalorder %s18, 3
    %p146 = por %p144, %p145
    %p148 = scmp.ne.s32.totalorder %s133, %s147
    %p149 = scmp.eq.s32.totalorder %s18, 0
    %p150 = por %p148, %p149
    %s152 = sadd.s32 %s151, 1
    %p155 = scmp.eq.s32.totalorder %s12, 3
    %p156 = scmp.ne.s32.totalorder %s151, %s153
    %p157 = scmp.eq.s32.totalorder %s12, 0
    %p158 = por %p156, %p157
    %p159 = scmp.ne.s32.totalorder %s151, %s153
    %p160 = scmp.eq.s32.totalorder %s17, 3
    %p161 = por %p159, %p160
    %p162 = scmp.ne.s32.totalorder %s153, %s154
    %p163 = scmp.eq.s32.totalorder %s17, 0
    %p164 = por %p162, %p163
    %p165 = scmp.ne.s32.totalorder %s153, %s154
    %p166 = scmp.eq.s32.totalorder %s18, 3
    %p167 = por %p165, %p166
    %p169 = scmp.ne.s32.totalorder %s154, %s168
    %p170 = scmp.eq.s32.totalorder %s18, 0
    %p171 = por %p169, %p170
    %s172 = ssub.s32 %s19, %s31
    %s173 = ssub.s32 %s20, %s27
    %s174 = sor.u32 %s172, %s173
    %p175 = scmp.eq.s32.totalorder %s174, 0
    %s177 = sadd.s32 %s176, 1
    %s178 = scalar_select %p175, %s176, %s177
    %p181 = pneg %p175
    %p182 = scmp.eq.s32.totalorder %s12, 3
    %p183 = por %p181, %p182
    %p184 = scmp.ne.s32.totalorder %s176, %s179
    %p185 = scmp.eq.s32.totalorder %s12, 0
    %p186 = por %p184, %p185
    %p187 = scmp.ne.s32.totalorder %s176, %s179
    %p188 = scmp.eq.s32.totalorder %s17, 3
    %p189 = por %p187, %p188
    %p190 = scmp.ne.s32.totalorder %s179, %s180
    %p191 = scmp.eq.s32.totalorder %s17, 0
    %p192 = por %p190, %p191
    %p193 = scmp.ne.s32.totalorder %s179, %s180
    %p194 = scmp.eq.s32.totalorder %s18, 3
    %p195 = por %p193, %p194
    %p197 = scmp.ne.s32.totalorder %s180, %s196
    %p198 = scmp.eq.s32.totalorder %s18, 0
    %p199 = por %p197, %p198
    %p200 = scmp.le.s32.totalorder 1, %s12
    %p201 = scmp.lt.s32.totalorder %s12, 5
    %p202 = pnand %p200, %p201
    %p203 = pneg %p202
    // Predicated region
    $region9: #{basic_block_forward.3} parent=5 // pred_check
      _
    $region10: #{basic_block_forward.3} parent=5 // pred_check_branch
      %205 = sbr.rel (%p202) target = $region12
    $region11: #{basic_block_forward.3} parent=5 // pred_region
      %s206 = ssub.s32 %s12, 1
      // Predicated region
      $region13: #{basic_block_forward.3} parent=11 // pred_check
        %p207 = pneg %p73
      $region14: #{basic_block_forward.3} parent=11 // pred_check_branch
        %209 = sbr.rel (%p207) target = $region16
      $region15: #{basic_block_forward.3} parent=11 // pred_region
        _
      $region16: #{basic_block_forward.3} parent=11 // pred_fallthru
        _
      // Predicated region
      $region17: #{basic_block_forward.3} parent=11 // pred_check
        %p210 = pneg %p94
      $region18: #{basic_block_forward.3} parent=11 // pred_check_branch
        %212 = sbr.rel (%p210) target = $region20
      $region19: #{basic_block_forward.3} parent=11 // pred_region
        _
      $region20: #{basic_block_forward.3} parent=11 // pred_fallthru
        _
      // Predicated region
      $region21: #{basic_block_forward.3} parent=11 // pred_check
        %p213 = pneg %p143
      $region22: #{basic_block_forward.3} parent=11 // pred_check_branch
        %215 = sbr.rel (%p213) target = $region24
      $region23: #{basic_block_forward.3} parent=11 // pred_region
        _
      $region24: #{basic_block_forward.3} parent=11 // pred_fallthru
        _
      // Predicated region
      $region25: #{basic_block_forward.3} parent=11 // pred_check
        %p216 = pneg %p164
      $region26: #{basic_block_forward.3} parent=11 // pred_check_branch
        %218 = sbr.rel (%p216) target = $region28
      $region27: #{basic_block_forward.3} parent=11 // pred_region
        _
      $region28: #{basic_block_forward.3} parent=11 // pred_fallthru
        _
    $region12: #{basic_block_forward.3} parent=5 // pred_fallthru
      _
    %p219 = scmp.lt.s32.totalorder %s12, 4
    // Predicated region
    $region29: #{basic_block_forward.3} parent=5 // pred_check
      %p220 = pneg %p219
    $region30: #{basic_block_forward.3} parent=5 // pred_check_branch
      %222 = sbr.rel (%p220) target = $region32
    $region31: #{basic_block_forward.3} parent=5 // pred_region
      // Predicated region
      $region33: #{basic_block_forward.3} parent=31 // pred_check
        %p223 = pneg %p46
      $region34: #{basic_block_forward.3} parent=31 // pred_check_branch
        %225 = sbr.rel (%p223) target = $region36
      $region35: #{basic_block_forward.3} parent=31 // pred_region
        %p226 = scmp.lt.s32.totalorder %s19, 1
        %s227 = scalar_select %p226, %s19, 1
        %p228 = scmp.lt.s32.totalorder %s20, 1
        %s229 = scalar_select %p228, %s20, 1
        %s230 = smul.addr %s229, 12
        %s231 = smul.addr %s227, 24
        %s232 = sadd.s32 %s230, %s231
        %s233 = smul.addr %s232, 4
        %s234 = scalar_lea.vmem %s0, %s233
      $region36: #{basic_block_forward.3} parent=31 // pred_fallthru
        _
      // Predicated region
      $region37: #{basic_block_forward.3} parent=31 // pred_check
        %p235 = pneg %p116
      $region38: #{basic_block_forward.3} parent=31 // pred_check_branch
        %237 = sbr.rel (%p235) target = $region40
      $region39: #{basic_block_forward.3} parent=31 // pred_region
        %s238 = smul.u32 4, %s20
        %p239 = scmp.lt.s32.totalorder %s19, 1
        %s240 = scalar_select %p239, %s19, 1
        %p241 = scmp.lt.s32.totalorder %s238, 7
        %s242 = scalar_select %p241, %s238, 7
        %s243 = smul.addr %s240, 8
        %s244 = sadd.s32 %s242, %s243
        %s245 = smul.addr %s244, 8
        %s246 = scalar_lea.vmem %s3, %s245
        %s247 = smul.u32 4, %s20
      $region40: #{basic_block_forward.3} parent=31 // pred_fallthru
        _
    $region32: #{basic_block_forward.3} parent=5 // pred_fallthru
      _
    %p248 = scmp.le.s32.totalorder 1, %s12
    %p249 = scmp.lt.s32.totalorder %s12, 5
    %p250 = pnand %p248, %p249
    %p251 = pneg %p250
    // Predicated region
    $region41: #{basic_block_forward.3} parent=5 // pred_check
      _
    $region42: #{basic_block_forward.3} parent=5 // pred_check_branch
      %253 = sbr.rel (%p250) target = $region44
    $region43: #{basic_block_forward.3} parent=5 // pred_region
      %s254 = ssub.s32 %s12, 1
      %p255 = scmp.lt.s32.totalorder %s21, 1
      %s256 = scalar_select %p255, %s21, 1
      %p257 = scmp.lt.s32.totalorder %s22, 1
      %s258 = scalar_select %p257, %s22, 1
      %s259 = smul.addr %s258, 12
      %s260 = smul.addr %s256, 24
      %s261 = sadd.s32 %s259, %s260
      %s262 = smul.addr %s261, 4
      %s263 = scalar_lea.vmem %s0, %s262
      %p264 = pneg %p52
      %p265 = pneg %p49
      %p266 = pneg %p73
      %p267 = pneg %p70
      %p268 = pneg %p94
      %p269 = pneg %p91
      %s270 = smul.u32 4, %s22
      %p271 = scmp.lt.s32.totalorder %s21, 1
      %s272 = scalar_select %p271, %s21, 1
      %p273 = scmp.lt.s32.totalorder %s270, 7
      %s274 = scalar_select %p273, %s270, 7
      %s275 = smul.addr %s272, 8
      %s276 = sadd.s32 %s274, %s275
      %s277 = smul.addr %s276, 8
      %s278 = scalar_lea.vmem %s3, %s277
      %p279 = pneg %p122
      %p280 = pneg %p119
      %p281 = pneg %p143
      %p282 = pneg %p140
      %p283 = pneg %p164
      %p284 = pneg %p161
      %p285 = pneg %p192
      %p286 = pneg %p189
      %s287 = smul.u32 4, %s22
      %p288 = scmp.lt.s32.totalorder %s21, 1
      %s289 = scalar_select %p288, %s21, 1
      %p290 = scmp.lt.s32.totalorder %s287, 7
      %s291 = scalar_select %p290, %s287, 7
      %s292 = smul.addr %s289, 8
      %s293 = sadd.s32 %s291, %s292
      %s294 = smul.addr %s293, 8
      %s295 = scalar_lea.vmem %s6, %s294
      %p296 = scmp.lt.s32.totalorder %s21, 1
      %s297 = scalar_select %p296, %s21, 1
      %p298 = scmp.lt.s32.totalorder %s22, 1
      %s299 = scalar_select %p298, %s22, 1
      %s300 = smul.addr %s299, 12
      %s301 = smul.addr %s297, 24
      %s302 = sadd.s32 %s300, %s301
      %s303 = smul.addr %s302, 4
      %s304 = scalar_lea.vmem %s0, %s303
      %s305 = smul.u32 4, %s22
      %p306 = scmp.lt.s32.totalorder %s21, 1
      %s307 = scalar_select %p306, %s21, 1
      %p308 = scmp.lt.s32.totalorder %s305, 7
      %s309 = scalar_select %p308, %s305, 7
      %s310 = smul.addr %s307, 8
      %s311 = sadd.s32 %s309, %s310
      %s312 = smul.addr %s311, 8
      %s313 = scalar_lea.vmem %s3, %s312
      %s314 = smul.u32 4, %s22
      %s315 = smul.u32 4, %s22
      %p316 = scmp.lt.s32.totalorder %s21, 1
      %s317 = scalar_select %p316, %s21, 1
      %p318 = scmp.lt.s32.totalorder %s315, 7
      %s319 = scalar_select %p318, %s315, 7
      %s320 = smul.addr %s317, 8
      %s321 = sadd.s32 %s319, %s320
      %s322 = smul.addr %s321, 8
      %s323 = scalar_lea.vmem %s6, %s322
      %s324 = smul.u32 4, %s22
      %v326 = vld [vmem:[%s304] sm:$0xf]
      %v327 = vld [vmem:[%s304 + $0x8] sm:$0xf]
      %v328 = vld [vmem:[%s304 + $0x10] sm:$0xf]
      %v329 = vld [vmem:[%s304 + $0x18] sm:$0xf]
      %vm330 = vcmask 60416
      %331 = vst.msk [vmem:[#allocation2] sm:$0xf] %vm330, %v326
      %332 = vst.msk [vmem:[#allocation2 + $0x4] sm:$0xf] %vm330, %v327
      %333 = vst.msk [vmem:[#allocation2 + $0x8] sm:$0xf] %vm330, %v328
      %334 = vst.msk [vmem:[#allocation2 + $0xc] sm:$0xf] %vm330, %v329
      %v335 = vld [vmem:[%s304] sm:$0xf]
      %v336 = vld [vmem:[%s304 + $0x4] sm:$0x1]
      %v337 = vld [vmem:[%s304 + $0x8] sm:$0xf]
      %v338 = vld [vmem:[%s304 + $0xc] sm:$0x1]
      %v339 = vld [vmem:[%s304 + $0x10] sm:$0xf]
      %v340 = vld [vmem:[%s304 + $0x14] sm:$0x1]
      %v341 = vld [vmem:[%s304 + $0x18] sm:$0xf]
      %v342 = vld [vmem:[%s304 + $0x1c] sm:$0x1]
      %vm343 = vsmask.f32 3328
      %vm344 = vsmask.f32 7440
      %vm345 = vmor %vm343, %vm344
      %v347 = vshrl.u32 %v335, 16
      %v349 = vrot.slane %v347, 4
      %v350 = vshll.u32 %v335, 16
      %v352 = vrot.slane %v350, 5
      %v353 = vor.u32 %v349, %v352
      %v354 = vrot.slane %v353, 4
      %v356 = vshll.u32 %v336, 16
      %v358 = vrot.slane %v356, 5
      %v359 = vsel %vm345, %v354, %v358
      %v361 = vshrl.u32 %v337, 16
      %v363 = vrot.slane %v361, 4
      %v364 = vshll.u32 %v337, 16
      %v366 = vrot.slane %v364, 5
      %v367 = vor.u32 %v363, %v366
      %v368 = vrot.slane %v367, 4
      %v370 = vshll.u32 %v338, 16
      %v372 = vrot.slane %v370, 5
      %v373 = vsel %vm345, %v368, %v372
      %v375 = vshrl.u32 %v339, 16
      %v377 = vrot.slane %v375, 4
      %v378 = vshll.u32 %v339, 16
      %v380 = vrot.slane %v378, 5
      %v381 = vor.u32 %v377, %v380
      %v382 = vrot.slane %v381, 4
      %v384 = vshll.u32 %v340, 16
      %v386 = vrot.slane %v384, 5
      %v387 = vsel %vm345, %v382, %v386
      %v389 = vshrl.u32 %v341, 16
      %v391 = vrot.slane %v389, 4
      %v392 = vshll.u32 %v341, 16
      %v394 = vrot.slane %v392, 5
      %v395 = vor.u32 %v391, %v394
      %v396 = vrot.slane %v395, 4
      %v398 = vshll.u32 %v342, 16
      %v400 = vrot.slane %v398, 5
      %v401 = vsel %vm345, %v396, %v400
      %402 = vrot.lane.b32.xlu0 %v359, 8
      %v403 = vpop.permute.xlu0 %402
      %404 = vrot.lane.b32.xlu0 %v373, 8
      %v405 = vpop.permute.xlu0 %404
      %406 = vrot.lane.b32.xlu0 %v387, 8
      %v407 = vpop.permute.xlu0 %406
      %408 = vrot.lane.b32.xlu0 %v401, 8
      %v409 = vpop.permute.xlu0 %408
      %vm414 = vcmask 126016
      %415 = vst.msk [vmem:[#allocation2] sm:$0xf] %vm414, %v403
      %416 = vst.msk [vmem:[#allocation2 + $0x4] sm:$0xf] %vm414, %v405
      %417 = vst.msk [vmem:[#allocation2 + $0x8] sm:$0xf] %vm414, %v407
      %418 = vst.msk [vmem:[#allocation2 + $0xc] sm:$0xf] %vm414, %v409
      %v419 = vld [vmem:[%s304] sm:$0xe]
      %v420 = vld [vmem:[%s304 + $0x4] sm:$0x1]
      %v421 = vld [vmem:[%s304 + $0x8] sm:$0xe]
      %v422 = vld [vmem:[%s304 + $0xc] sm:$0x1]
      %v423 = vld [vmem:[%s304 + $0x10] sm:$0xe]
      %v424 = vld [vmem:[%s304 + $0x14] sm:$0x1]
      %v425 = vld [vmem:[%s304 + $0x18] sm:$0xe]
      %v426 = vld [vmem:[%s304 + $0x1c] sm:$0x1]
      %vm435 = vcmask 1042432
      %vm436 = vcmask 1046532
      %vm437 = vmor %vm435, %vm436
      %v438 = vrot.slane %v419, 5
      %v439 = vrot.slane %v438, 4
      %v440 = vrot.slane %v420, 5
      %v441 = vsel %vm437, %v439, %v440
      %v442 = vrot.slane %v421, 5
      %v443 = vrot.slane %v442, 4
      %v444 = vrot.slane %v422, 5
      %v445 = vsel %vm437, %v443, %v444
      %v446 = vrot.slane %v423, 5
      %v447 = vrot.slane %v446, 4
      %v448 = vrot.slane %v424, 5
      %v449 = vsel %vm437, %v447, %v448
      %v450 = vrot.slane %v425, 5
      %v451 = vrot.slane %v450, 4
      %v452 = vrot.slane %v426, 5
      %v453 = vsel %vm437, %v451, %v452
      %454 = vrot.lane.b32.xlu0 %v441, 16
      %v455 = vpop.permute.xlu0 %454
      %456 = vrot.lane.b32.xlu0 %v445, 16
      %v457 = vpop.permute.xlu0 %456
      %458 = vrot.lane.b32.xlu0 %v449, 16
      %v459 = vpop.permute.xlu0 %458
      %460 = vrot.lane.b32.xlu0 %v453, 16
      %v461 = vpop.permute.xlu0 %460
      %vm466 = vcmask 191616
      %467 = vst.msk [vmem:[#allocation2] sm:$0xf] %vm466, %v455
      %468 = vst.msk [vmem:[#allocation2 + $0x4] sm:$0xf] %vm466, %v457
      %469 = vst.msk [vmem:[#allocation2 + $0x8] sm:$0xf] %vm466, %v459
      %470 = vst.msk [vmem:[#allocation2 + $0xc] sm:$0xf] %vm466, %v461
      %s471 = scalar_lea.vmem %s304, 8
      %v472 = vld [vmem:[%s471] sm:$0xf]
      %v473 = vld [vmem:[%s471 + $0x8] sm:$0xf]
      %v474 = vld [vmem:[%s471 + $0x10] sm:$0xf]
      %v475 = vld [vmem:[%s471 + $0x18] sm:$0xf]
      %480 = vrot.lane.b32.xlu0 %v472, 24
      %v481 = vpop.permute.xlu0 %480
      %482 = vrot.lane.b32.xlu0 %v473, 24
      %v483 = vpop.permute.xlu0 %482
      %484 = vrot.lane.b32.xlu0 %v474, 24
      %v485 = vpop.permute.xlu0 %484
      %486 = vrot.lane.b32.xlu0 %v475, 24
      %v487 = vpop.permute.xlu0 %486
      %vm492 = vcmask 257216
      %493 = vst.msk [vmem:[#allocation2] sm:$0xf] %vm492, %v481
      %494 = vst.msk [vmem:[#allocation2 + $0x4] sm:$0xf] %vm492, %v483
      %495 = vst.msk [vmem:[#allocation2 + $0x8] sm:$0xf] %vm492, %v485
      %496 = vst.msk [vmem:[#allocation2 + $0xc] sm:$0xf] %vm492, %v487
      %v497 = vld [vmem:[%s471] sm:$0xf]
      %v498 = vld [vmem:[%s471 + $0x4] sm:$0x1]
      %v499 = vld [vmem:[%s471 + $0x8] sm:$0xf]
      %v500 = vld [vmem:[%s471 + $0xc] sm:$0x1]
      %v501 = vld [vmem:[%s471 + $0x10] sm:$0xf]
      %v502 = vld [vmem:[%s471 + $0x14] sm:$0x1]
      %v503 = vld [vmem:[%s471 + $0x18] sm:$0xf]
      %v504 = vld [vmem:[%s471 + $0x1c] sm:$0x1]
      %v506 = vshrl.u32 %v497, 16
      %v508 = vrot.slane %v506, 4
      %v509 = vshll.u32 %v497, 16
      %v511 = vrot.slane %v509, 5
      %v512 = vor.u32 %v508, %v511
      %v513 = vrot.slane %v512, 4
      %v515 = vshll.u32 %v498, 16
      %v517 = vrot.slane %v515, 5
      %v518 = vsel %vm345, %v513, %v517
      %v520 = vshrl.u32 %v499, 16
      %v522 = vrot.slane %v520, 4
      %v523 = vshll.u32 %v499, 16
      %v525 = vrot.slane %v523, 5
      %v526 = vor.u32 %v522, %v525
      %v527 = vrot.slane %v526, 4
      %v529 = vshll.u32 %v500, 16
      %v531 = vrot.slane %v529, 5
      %v532 = vsel %vm345, %v527, %v531
      %v534 = vshrl.u32 %v501, 16
      %v536 = vrot.slane %v534, 4
      %v537 = vshll.u32 %v501, 16
      %v539 = vrot.slane %v537, 5
      %v540 = vor.u32 %v536, %v539
      %v541 = vrot.slane %v540, 4
      %v543 = vshll.u32 %v502, 16
      %v545 = vrot.slane %v543, 5
      %v546 = vsel %vm345, %v541, %v545
      %v548 = vshrl.u32 %v503, 16
      %v550 = vrot.slane %v548, 4
      %v551 = vshll.u32 %v503, 16
      %v553 = vrot.slane %v551, 5
      %v554 = vor.u32 %v550, %v553
      %v555 = vrot.slane %v554, 4
      %v557 = vshll.u32 %v504, 16
      %v559 = vrot.slane %v557, 5
      %v560 = vsel %vm345, %v555, %v559
      %561 = vrot.lane.b32.xlu0 %v518, 32
      %v562 = vpop.permute.xlu0 %561
      %563 = vrot.lane.b32.xlu0 %v532, 32
      %v564 = vpop.permute.xlu0 %563
      %565 = vrot.lane.b32.xlu0 %v546, 32
      %v566 = vpop.permute.xlu0 %565
      %567 = vrot.lane.b32.xlu0 %v560, 32
      %v568 = vpop.permute.xlu0 %567
      %vm573 = vcmask 322816
      %574 = vst.msk [vmem:[#allocation2] sm:$0xf] %vm573, %v562
      %575 = vst.msk [vmem:[#allocation2 + $0x4] sm:$0xf] %vm573, %v564
      %576 = vst.msk [vmem:[#allocation2 + $0x8] sm:$0xf] %vm573, %v566
      %577 = vst.msk [vmem:[#allocation2 + $0xc] sm:$0xf] %vm573, %v568
      %v578 = vld [vmem:[%s471] sm:$0xe]
      %v579 = vld [vmem:[%s471 + $0x4] sm:$0x1]
      %v580 = vld [vmem:[%s471 + $0x8] sm:$0xe]
      %v581 = vld [vmem:[%s471 + $0xc] sm:$0x1]
      %v582 = vld [vmem:[%s471 + $0x10] sm:$0xe]
      %v583 = vld [vmem:[%s471 + $0x14] sm:$0x1]
      %v584 = vld [vmem:[%s471 + $0x18] sm:$0xe]
      %v585 = vld [vmem:[%s471 + $0x1c] sm:$0x1]
      %v594 = vrot.slane %v578, 5
      %v595 = vrot.slane %v594, 4
      %v596 = vrot.slane %v579, 5
      %v597 = vsel %vm437, %v595, %v596
      %v598 = vrot.slane %v580, 5
      %v599 = vrot.slane %v598, 4
      %v600 = vrot.slane %v581, 5
      %v601 = vsel %vm437, %v599, %v600
      %v602 = vrot.slane %v582, 5
      %v603 = vrot.slane %v602, 4
      %v604 = vrot.slane %v583, 5
      %v605 = vsel %vm437, %v603, %v604
      %v606 = vrot.slane %v584, 5
      %v607 = vrot.slane %v606, 4
      %v608 = vrot.slane %v585, 5
      %v609 = vsel %vm437, %v607, %v608
      %610 = vrot.lane.b32.xlu0 %v597, 40
      %v611 = vpop.permute.xlu0 %610
      %612 = vrot.lane.b32.xlu0 %v601, 40
      %v613 = vpop.permute.xlu0 %612
      %614 = vrot.lane.b32.xlu0 %v605, 40
      %v615 = vpop.permute.xlu0 %614
      %616 = vrot.lane.b32.xlu0 %v609, 40
      %v617 = vpop.permute.xlu0 %616
      %vm622 = vcmask 388416
      %623 = vst.msk [vmem:[#allocation2] sm:$0xf] %vm622, %v611
      %624 = vst.msk [vmem:[#allocation2 + $0x4] sm:$0xf] %vm622, %v613
      %625 = vst.msk [vmem:[#allocation2 + $0x8] sm:$0xf] %vm622, %v615
      %626 = vst.msk [vmem:[#allocation2 + $0xc] sm:$0xf] %vm622, %v617
      %s627 = scalar_lea.vmem %s304, 16
      %v628 = vld [vmem:[%s627] sm:$0xf]
      %v629 = vld [vmem:[%s627 + $0x8] sm:$0xf]
      %v630 = vld [vmem:[%s627 + $0x10] sm:$0xf]
      %v631 = vld [vmem:[%s627 + $0x18] sm:$0xf]
      %636 = vrot.lane.b32.xlu0 %v628, 48
      %v637 = vpop.permute.xlu0 %636
      %638 = vrot.lane.b32.xlu0 %v629, 48
      %v639 = vpop.permute.xlu0 %638
      %640 = vrot.lane.b32.xlu0 %v630, 48
      %v641 = vpop.permute.xlu0 %640
      %642 = vrot.lane.b32.xlu0 %v631, 48
      %v643 = vpop.permute.xlu0 %642
      %vm648 = vcmask 454016
      %649 = vst.msk [vmem:[#allocation2] sm:$0xf] %vm648, %v637
      %650 = vst.msk [vmem:[#allocation2 + $0x4] sm:$0xf] %vm648, %v639
      %651 = vst.msk [vmem:[#allocation2 + $0x8] sm:$0xf] %vm648, %v641
      %652 = vst.msk [vmem:[#allocation2 + $0xc] sm:$0xf] %vm648, %v643
      %v653 = vld [vmem:[%s627] sm:$0xf]
      %v654 = vld [vmem:[%s627 + $0x4] sm:$0x1]
      %v655 = vld [vmem:[%s627 + $0x8] sm:$0xf]
      %v656 = vld [vmem:[%s627 + $0xc] sm:$0x1]
      %v657 = vld [vmem:[%s627 + $0x10] sm:$0xf]
      %v658 = vld [vmem:[%s627 + $0x14] sm:$0x1]
      %v659 = vld [vmem:[%s627 + $0x18] sm:$0xf]
      %v660 = vld [vmem:[%s627 + $0x1c] sm:$0x1]
      %v662 = vshrl.u32 %v653, 16
      %v664 = vrot.slane %v662, 4
      %v665 = vshll.u32 %v653, 16
      %v667 = vrot.slane %v665, 5
      %v668 = vor.u32 %v664, %v667
      %v669 = vrot.slane %v668, 4
      %v671 = vshll.u32 %v654, 16
      %v673 = vrot.slane %v671, 5
      %v674 = vsel %vm345, %v669, %v673
      %v676 = vshrl.u32 %v655, 16
      %v678 = vrot.slane %v676, 4
      %v679 = vshll.u32 %v655, 16
      %v681 = vrot.slane %v679, 5
      %v682 = vor.u32 %v678, %v681
      %v683 = vrot.slane %v682, 4
      %v685 = vshll.u32 %v656, 16
      %v687 = vrot.slane %v685, 5
      %v688 = vsel %vm345, %v683, %v687
      %v690 = vshrl.u32 %v657, 16
      %v692 = vrot.slane %v690, 4
      %v693 = vshll.u32 %v657, 16
      %v695 = vrot.slane %v693, 5
      %v696 = vor.u32 %v692, %v695
      %v697 = vrot.slane %v696, 4
      %v699 = vshll.u32 %v658, 16
      %v701 = vrot.slane %v699, 5
      %v702 = vsel %vm345, %v697, %v701
      %v704 = vshrl.u32 %v659, 16
      %v706 = vrot.slane %v704, 4
      %v707 = vshll.u32 %v659, 16
      %v709 = vrot.slane %v707, 5
      %v710 = vor.u32 %v706, %v709
      %v711 = vrot.slane %v710, 4
      %v713 = vshll.u32 %v660, 16
      %v715 = vrot.slane %v713, 5
      %v716 = vsel %vm345, %v711, %v715
      %717 = vrot.lane.b32.xlu0 %v674, 56
      %v718 = vpop.permute.xlu0 %717
      %719 = vrot.lane.b32.xlu0 %v688, 56
      %v720 = vpop.permute.xlu0 %719
      %721 = vrot.lane.b32.xlu0 %v702, 56
      %v722 = vpop.permute.xlu0 %721
      %723 = vrot.lane.b32.xlu0 %v716, 56
      %v724 = vpop.permute.xlu0 %723
      %vm729 = vcmask 519616
      %730 = vst.msk [vmem:[#allocation2] sm:$0xf] %vm729, %v718
      %731 = vst.msk [vmem:[#allocation2 + $0x4] sm:$0xf] %vm729, %v720
      %732 = vst.msk [vmem:[#allocation2 + $0x8] sm:$0xf] %vm729, %v722
      %733 = vst.msk [vmem:[#allocation2 + $0xc] sm:$0xf] %vm729, %v724
      %v734 = vld [vmem:[%s627] sm:$0xe]
      %v735 = vld [vmem:[%s627 + $0x4] sm:$0x1]
      %v736 = vld [vmem:[%s627 + $0x8] sm:$0xe]
      %v737 = vld [vmem:[%s627 + $0xc] sm:$0x1]
      %v738 = vld [vmem:[%s627 + $0x10] sm:$0xe]
      %v739 = vld [vmem:[%s627 + $0x14] sm:$0x1]
      %v740 = vld [vmem:[%s627 + $0x18] sm:$0xe]
      %v741 = vld [vmem:[%s627 + $0x1c] sm:$0x1]
      %v750 = vrot.slane %v734, 5
      %v751 = vrot.slane %v750, 4
      %v752 = vrot.slane %v735, 5
      %v753 = vsel %vm437, %v751, %v752
      %v754 = vrot.slane %v736, 5
      %v755 = vrot.slane %v754, 4
      %v756 = vrot.slane %v737, 5
      %v757 = vsel %vm437, %v755, %v756
      %v758 = vrot.slane %v738, 5
      %v759 = vrot.slane %v758, 4
      %v760 = vrot.slane %v739, 5
      %v761 = vsel %vm437, %v759, %v760
      %v762 = vrot.slane %v740, 5
      %v763 = vrot.slane %v762, 4
      %v764 = vrot.slane %v741, 5
      %v765 = vsel %vm437, %v763, %v764
      %766 = vrot.lane.b32.xlu0 %v753, 64
      %v767 = vpop.permute.xlu0 %766
      %768 = vrot.lane.b32.xlu0 %v757, 64
      %v769 = vpop.permute.xlu0 %768
      %770 = vrot.lane.b32.xlu0 %v761, 64
      %v771 = vpop.permute.xlu0 %770
      %772 = vrot.lane.b32.xlu0 %v765, 64
      %v773 = vpop.permute.xlu0 %772
      %vm778 = vcmask 585216
      %779 = vst.msk [vmem:[#allocation2] sm:$0xf] %vm778, %v767
      %780 = vst.msk [vmem:[#allocation2 + $0x4] sm:$0xf] %vm778, %v769
      %781 = vst.msk [vmem:[#allocation2 + $0x8] sm:$0xf] %vm778, %v771
      %782 = vst.msk [vmem:[#allocation2 + $0xc] sm:$0xf] %vm778, %v773
      %v783 = vld [vmem:[#allocation2] sm:$0xf]
      %v784 = vld [vmem:[#allocation2 + $0x4] sm:$0xf]
      %v785 = vld [vmem:[#allocation2 + $0x8] sm:$0xf]
      %v786 = vld [vmem:[#allocation2 + $0xc] sm:$0xf]
      %v787 = vld [vmem:[%s1] sm:$0xf]
      %v788 = vld [vmem:[%s1 + $0x4] sm:$0xf]
      %v789 = vld [vmem:[%s1 + $0x8] sm:$0xf]
      %v790 = vld [vmem:[%s1 + $0xc] sm:$0xf]
      %v791 = vld [vmem:[%s1 + $0x10] sm:$0xf]
      %v792 = vld [vmem:[%s1 + $0x14] sm:$0xf]
      %v793 = vld [vmem:[%s1 + $0x18] sm:$0xf]
      %v794 = vld [vmem:[%s1 + $0x1c] sm:$0xf]
      %v795 = vld [vmem:[%s1 + $0x20] sm:$0xf]
      %v796 = vld [vmem:[%s2] sm:$0x1]
      %v798 = vlaneseq
      %v799 = vshrl.u32 %v798, 7
      %v800 = vsub.s32 0, %v799
      %v801 = vrot.slane %v796, %v800
      %v807 = vunpack.c.l.b16 %v783
      %v808 = vunpack.c.l.b16 %v784
      %v809 = vunpack.c.l.b16 %v785
      %v810 = vunpack.c.l.b16 %v786
      %v811 = vpack.c.b16 %v808, %v807
      %v812 = vpack.c.b16 %v810, %v809
      %v822 = vunpack.c.l.b16 %v787
      %v823 = vunpack.c.l.b16 %v788
      %v824 = vunpack.c.l.b16 %v789
      %v825 = vunpack.c.l.b16 %v790
      %v826 = vunpack.c.l.b16 %v791
      %v827 = vunpack.c.l.b16 %v792
      %v828 = vunpack.c.l.b16 %v793
      %v829 = vunpack.c.l.b16 %v794
      %v830 = vunpack.c.l.b16 %v795
      %v831 = vpack.c.b16 %v823, %v822
      %v832 = vpack.c.b16 %v825, %v824
      %v833 = vpack.c.b16 %v827, %v826
      %v834 = vpack.c.b16 %v829, %v828
      %v835 = vpack.c.b16 %v830, %v830
      %vm840 = vcmask 588800
      %v842 = vsel %vm840, %v811, 0
      %v845 = vsel %vm840, %v812, 0
      %vm847 = vcmask 1043456
      %v849 = vsel %vm847, %v835, 0
      %851 = vmatprep.subr.bf16.mxu0 0
      %852 = vmatpush1.bf16.msra.mxu0 0
      %853 = vmatprep.subr.bf16.mxu0 0
      %854 = vmatpush1.bf16.msra.mxu0 0
      %855 = vmatprep.subr.bf16.mxu0 0
      %856 = vmatpush1.bf16.msra.mxu0 0
      %857 = vmatprep.subr.bf16.mxu0 0
      %858 = vmatpush1.bf16.msra.mxu0 %v849
      %859 = vmatprep.subr.bf16.mxu0 0
      %860 = vmatpush1.bf16.msra.mxu0 %v834
      %861 = vmatprep.subr.bf16.mxu0 0
      %862 = vmatpush1.bf16.msra.mxu0 %v833
      %863 = vmatprep.subr.bf16.mxu0 0
      %864 = vmatpush1.bf16.msra.mxu0 %v832
      %865 = vmatprep.subr.bf16.mxu0 0
      %866 = vmatpush1.bf16.msra.mxu0 %v831
      %867 = vmatprep.subr.bf16.mxu0 0
      %868 = vmatpush2.bf16.msra.mxu0 0
      %869 = vmatprep.subr.bf16.mxu0 0
      %870 = vmatpush2.bf16.msra.mxu0 0
      %871 = vmatprep.subr.bf16.mxu0 0
      %872 = vmatpush2.bf16.msra.mxu0 0
      %873 = vmatprep.subr.bf16.mxu0 0
      %874 = vmatpush2.bf16.msra.mxu0 0
      %875 = vmatprep.subr.bf16.mxu0 0
      %876 = vmatpush2.bf16.msra.mxu0 0
      %877 = vmatprep.subr.bf16.mxu0 0
      %878 = vmatpush2.bf16.msra.mxu0 0
      %879 = vmatprep.subr.bf16.mxu0 0
      %880 = vmatpush2.bf16.msra.mxu0 0
      %881 = vmatprep.subr.bf16.mxu0 0
      %882 = vmatpush2.bf16.msra.mxu0 0
      %883 = vmatprep.mubr.bf16.mxu0 0
      %884 = vmatmul.mubr.bf16.gmra.mxu0 %v842
      %v885 = vpop.f32.mrf.mxu0
      %v886 = vadd.f32 %v801, %v885
      %v887 = vpop.f32.mrf.mxu0
      %v888 = vpop.f32.mrf.mxu0
      %v889 = vadd.f32 %v801, %v888
      %v890 = vpop.f32.mrf.mxu0
      %891 = vmatprep.mubr.bf16.mxu0 0
      %892 = vmatmul.mubr.bf16.gmra.mxu0 %v845
      %v893 = vpop.f32.mrf.mxu0
      %v894 = vadd.f32 %v801, %v893
      %v895 = vpop.f32.mrf.mxu0
      %v896 = vpop.f32.mrf.mxu0
      %v897 = vadd.f32 %v801, %v896
      %v898 = vpop.f32.mrf.mxu0
      %899 = vdwg.mxu0
      %v900 = vld [vmem:[%s313] sm:$0xff]
      %v901 = vld [vmem:[%s313 + $0x8] sm:$0xff]
      %v902 = vld [vmem:[%s313 + $0x10] sm:$0xff]
      %v903 = vld [vmem:[%s313 + $0x18] sm:$0xff]
      %v904 = vld [vmem:[%s4] sm:$0xf]
      %v905 = vld [vmem:[%s5] sm:$0x1]
      %v907 = vlaneseq
      %v908 = vshrl.u32 %v907, 7
      %v909 = vsub.s32 0, %v908
      %v910 = vrot.slane %v905, %v909
      %vm912 = vcmask 31744
      %v914 = vsel %vm912, %v900, 0
      %v917 = vsel %vm912, %v901, 0
      %v920 = vsel %vm912, %v902, 0
      %v923 = vsel %vm912, %v903, 0
      %v926 = vsel %vm847, %v904, 0
      %928 = vmatprep.subr.mxu0 0.0
      %929 = vmatpush1.msra.mxu0 0.0
      %930 = vmatprep.subr.mxu0 0.0
      %931 = vmatpush1.msra.mxu0 0.0
      %932 = vmatprep.subr.mxu0 0.0
      %933 = vmatpush1.msra.mxu0 0.0
      %934 = vmatprep.subr.mxu0 0.0
      %935 = vmatpush1.msra.mxu0 0.0
      %936 = vmatprep.subr.mxu0 0.0
      %937 = vmatpush1.msra.mxu0 0.0
      %938 = vmatprep.subr.mxu0 0.0
      %939 = vmatpush1.msra.mxu0 0.0
      %940 = vmatprep.subr.mxu0 0.0
      %941 = vmatpush1.msra.mxu0 0.0
      %942 = vmatprep.subr.mxu0 0.0
      %943 = vmatpush1.msra.mxu0 0.0
      %944 = vmatprep.subr.mxu0 0.0
      %945 = vmatpush1.msra.mxu0 0.0
      %946 = vmatprep.subr.mxu0 0.0
      %947 = vmatpush1.msra.mxu0 0.0
      %948 = vmatprep.subr.mxu0 0.0
      %949 = vmatpush1.msra.mxu0 0.0
      %950 = vmatprep.subr.mxu0 0.0
      %951 = vmatpush1.msra.mxu0 0.0
      %952 = vmatprep.subr.mxu0 0.0
      %953 = vmatpush1.msra.mxu0 0.0
      %954 = vmatprep.subr.mxu0 0.0
      %955 = vmatpush1.msra.mxu0 0.0
      %956 = vmatprep.subr.mxu0 0.0
      %957 = vmatpush1.msra.mxu0 0.0
      %958 = vmatprep.subr.mxu0 0.0
      %959 = vmatpush1.msra.mxu0 %v926
      %960 = vmatprep.subr.mxu0 0.0
      %961 = vmatpush2.msra.mxu0 0.0
      %962 = vmatprep.subr.mxu0 0.0
      %963 = vmatpush2.msra.mxu0 0.0
      %964 = vmatprep.subr.mxu0 0.0
      %965 = vmatpush2.msra.mxu0 0.0
      %966 = vmatprep.subr.mxu0 0.0
      %967 = vmatpush2.msra.mxu0 0.0
      %968 = vmatprep.subr.mxu0 0.0
      %969 = vmatpush2.msra.mxu0 0.0
      %970 = vmatprep.subr.mxu0 0.0
      %971 = vmatpush2.msra.mxu0 0.0
      %972 = vmatprep.subr.mxu0 0.0
      %973 = vmatpush2.msra.mxu0 0.0
      %974 = vmatprep.subr.mxu0 0.0
      %975 = vmatpush2.msra.mxu0 0.0
      %976 = vmatprep.subr.mxu0 0.0
      %977 = vmatpush2.msra.mxu0 0.0
      %978 = vmatprep.subr.mxu0 0.0
      %979 = vmatpush2.msra.mxu0 0.0
      %980 = vmatprep.subr.mxu0 0.0
      %981 = vmatpush2.msra.mxu0 0.0
      %982 = vmatprep.subr.mxu0 0.0
      %983 = vmatpush2.msra.mxu0 0.0
      %984 = vmatprep.subr.mxu0 0.0
      %985 = vmatpush2.msra.mxu0 0.0
      %986 = vmatprep.subr.mxu0 0.0
      %987 = vmatpush2.msra.mxu0 0.0
      %988 = vmatprep.subr.mxu0 0.0
      %989 = vmatpush2.msra.mxu0 0.0
      %990 = vmatprep.subr.mxu0 0.0
      %991 = vmatpush2.msra.mxu0 0.0
      %992 = vmatprep.mubr.f32.mxu0 0.0
      %993 = vmatmul.mubr.f32.gmra.mxu0 %v914
      %v994 = vpop.f32.mrf.mxu0
      %v995 = vadd.f32 %v910, %v994
      %v996 = vpop.f32.mrf.mxu0
      %997 = vmatprep.mubr.f32.mxu0 0.0
      %998 = vmatmul.mubr.f32.gmra.mxu0 %v917
      %v999 = vpop.f32.mrf.mxu0
      %v1000 = vadd.f32 %v910, %v999
      %v1001 = vpop.f32.mrf.mxu0
      %1002 = vmatprep.mubr.f32.mxu0 0.0
      %1003 = vmatmul.mubr.f32.gmra.mxu0 %v920
      %v1004 = vpop.f32.mrf.mxu0
      %v1005 = vadd.f32 %v910, %v1004
      %v1006 = vpop.f32.mrf.mxu0
      %1007 = vmatprep.mubr.f32.mxu0 0.0
      %1008 = vmatmul.mubr.f32.gmra.mxu0 %v923
      %v1009 = vpop.f32.mrf.mxu0
      %v1010 = vadd.f32 %v910, %v1009
      %v1011 = vpop.f32.mrf.mxu0
      %1012 = vdwg.mxu0
      %v1013 = vadd.f32 %v886, %v995
      %v1014 = vadd.f32 %v889, %v1000
      %v1015 = vadd.f32 %v894, %v1005
      %v1016 = vadd.f32 %v897, %v1010
      %v1017 = vmax.f32 %v1013, 0.0
      %v1018 = vmax.f32 %v1014, 0.0
      %v1019 = vmax.f32 %v1015, 0.0
      %v1020 = vmax.f32 %v1016, 0.0
      %vm1021 = vcmask 64512
      %1022 = vst.msk [vmem:[%s323] sm:$0xff] %vm1021, %v1017
      %1023 = vst.msk [vmem:[%s323 + $0x8] sm:$0xff] %vm1021, %v1018
      %1024 = vst.msk [vmem:[%s323 + $0x10] sm:$0xff] %vm1021, %v1019
      %1025 = vst.msk [vmem:[%s323 + $0x18] sm:$0xff] %vm1021, %v1020
      %s1026 = smul.u32 4, %s22
      %p1027 = scmp.lt.s32.totalorder %s21, 1
      %s1028 = scalar_select %p1027, %s21, 1
      %p1029 = scmp.lt.s32.totalorder %s1026, 7
      %s1030 = scalar_select %p1029, %s1026, 7
      %s1031 = smul.addr %s1028, 8
      %s1032 = sadd.s32 %s1030, %s1031
      %s1033 = smul.addr %s1032, 8
      %s1034 = scalar_lea.vmem %s6, %s1033
      // Predicated region
      $region45: #{basic_block_forward.3} parent=43 // pred_check
        %p1035 = pneg %p189
      $region46: #{basic_block_forward.3} parent=43 // pred_check_branch
        %1037 = sbr.rel (%p1035) target = $region48
      $region47: #{basic_block_forward.3} parent=43 // pred_region
        %s1038 = smul.u32 4, %s22
      $region48: #{basic_block_forward.3} parent=43 // pred_fallthru
        _
    $region44: #{basic_block_forward.3} parent=5 // pred_fallthru
      _
    %p1039 = scmp.le.s32.totalorder 2, %s12
    // Predicated region
    $region49: #{basic_block_forward.3} parent=5 // pred_check
      %p1040 = pneg %p1039
    $region50: #{basic_block_forward.3} parent=5 // pred_check_branch
      %1042 = sbr.rel (%p1040) target = $region52
    $region51: #{basic_block_forward.3} parent=5 // pred_region
      %s1043 = ssub.s32 %s12, 2
      // Predicated region
      $region53: #{basic_block_forward.3} parent=51 // pred_check
        %p1044 = pneg %p195
      $region54: #{basic_block_forward.3} parent=51 // pred_check_branch
        %1046 = sbr.rel (%p1044) target = $region56
      $region55: #{basic_block_forward.3} parent=51 // pred_region
        %s1047 = smul.u32 4, %s24
        %p1048 = scmp.lt.s32.totalorder %s23, 1
        %s1049 = scalar_select %p1048, %s23, 1
        %p1050 = scmp.lt.s32.totalorder %s1047, 7
        %s1051 = scalar_select %p1050, %s1047, 7
        %s1052 = smul.addr %s1049, 8
        %s1053 = sadd.s32 %s1051, %s1052
        %s1054 = smul.addr %s1053, 8
        %s1055 = scalar_lea.vmem %s6, %s1054
      $region56: #{basic_block_forward.3} parent=51 // pred_fallthru
        _
    $region52: #{basic_block_forward.3} parent=5 // pred_fallthru
      _
  $region6: #{basic_block_forward.3} parent=0 // loop_footer
    %s16 = sadd.s32 1, %s12
  $region7: #{basic_block_forward.3} parent=0 // loop_footer_branch
    %11 = sbr.rel target = $region3
  $region8: #{basic_block_forward.3} parent=0 // loop_exit
    _

</llo_original>
